<compile_context>
chip_gen: v6e
topology: v6e:2x2x1
jax: 0.10.0
libtpu: 0.0.40
codegen_flags: <defaults>
</compile_context>

<pallas_src>
import functools

import jax
import jax.numpy as jnp
from jax.experimental import pallas as pl
from jax.experimental.pallas import tpu as pltpu


# --------------------------- static planning ---------------------------------
def _reflection_plan(wh, k_size):
    """Static per-tap plan for a reflect-padded k-tap conv along rows of len wh.

    plan[t] = (interior_shift, ((col, src_shift), ...)) such that
      tap_t[:, r*wh + col] must equal x[:, r*wh + col + src_shift]
    cols = sorted tuple of boundary columns that need a (jidx == col) mask.
    Every column where the interior (cyclic) roll escapes its row is covered by
    a fix, and every fix source stays inside the row (asserted below).
    """
    pad_l = k_size // 2
    plan, cols = [], set()
    for t in range(k_size):
        base = t - pad_l
        fixes = []
        for j in range(max(0, pad_l - t)):                 # left reflection
            src = pad_l - t - j
            fixes.append((j, src - j))
        for j in range(max(0, wh + pad_l - t), wh):        # right reflection
            src = 2 * wh - 2 - (j + base)
            fixes.append((j, src - j))
        for j, s in fixes:
            assert 0 <= j + s < wh, "reflection source escapes its row"
        cols.update(j for j, _ in fixes)
        plan.append((base, tuple(fixes)))
    return tuple(plan), tuple(sorted(cols))


# --------------------------- in-kernel helpers --------------------------------
def _branch_compute(x, w1, b1, w2, b2, *, plan, col_masks, mm_dtype):
    """tanh(W2 @ relu(conv1d_k(reflect_pad(x); W1) + b1) + b2) on a (C, L) slab.

    Per-tap matmul accumulation (no sublane concat); k rolls + boundary selects
    implement the reflection padding on the VMEM-resident flattened slab.
    """
    L = x.shape[-1]
    cache = {0: x}

    def get(s):                       # get(s)[:, i] == x[:, i + s]  (cyclic)
        if s not in cache:
            cache[s] = pltpu.roll(x, (-s) % L, axis=1)
        return cache[s]

    acc = None
    for t, (base, fixes) in enumerate(plan):
        tap = get(base)
        for j, s in fixes:            # reflection boundary cells
            tap = jnp.where(col_masks[j], get(s), tap)
        part = jnp.dot(w1[t].astype(mm_dtype), tap.astype(mm_dtype),
                       preferred_element_type=jnp.float32)
        acc = part if acc is None else acc + part
    h1 = jnp.maximum(acc + b1, 0.0)                               # (C2, L) f32
    y = jnp.dot(w2.astype(mm_dtype), h1.astype(mm_dtype),
                preferred_element_type=jnp.float32) + b2
    return jnp.tanh(y)                                            # (C, L) f32


def _lifting_kernel(xe_ref, xo_ref,
                    wu1_ref, bu1_ref, wu2_ref, bu2_ref,
                    wp1_ref, bp1_ref, wp2_ref, bp2_ref,
                    c_ref, d_ref, *, wh, plan, cols, modified, mm_dtype):
    xe = xe_ref[0].astype(jnp.float32)            # (C, L) lane-dense slab
    xo = xo_ref[0].astype(jnp.float32)

    # Reflection masks hoisted: built once, shared by the U and P branches.
    jidx = jax.lax.broadcasted_iota(jnp.int32, xe.shape, 1) % wh
    col_masks = {j: jidx == j for j in cols}

    branch = functools.partial(_branch_compute, plan=plan,
                               col_masks=col_masks, mm_dtype=mm_dtype)
    U = (wu1_ref[...], bu1_ref[...], wu2_ref[...], bu2_ref[...])
    P = (wp1_ref[...], bp1_ref[...], wp2_ref[...], bp2_ref[...])

    if modified:
        c = xe + branch(xo, *U)
        d = xo - branch(c, *P)
    else:
        d = xo - branch(xe, *P)
        c = xe + branch(d, *U)

    c_ref[0] = c.astype(c_ref.dtype)
    d_ref[0] = d.astype(d_ref.dtype)


# ------------------------------ wrapper ---------------------------------------
_LIVE_FACTOR = 24   # ~ xe/xo/c/d double-buffered I/O + 4 roll slabs + hidden + temps


def _vmem_capacity_bytes():
    try:
        return int(pltpu.get_tpu_info().vmem_capacity_bytes)
    except Exception:                 # conservative fallback (v7x per-core VMEM)
        return 64 * 1024 * 1024


def _pick_h_tile(H, Wh, C, vmem_bytes, n_batch):
    """Largest H-tile (divisor of H) whose flattened lane width is a multiple
    of 128 (or the full extent) and whose working set fits the VMEM budget."""
    budget_block = max(256 << 10, min(4 << 20, vmem_bytes // (2 * _LIVE_FACTOR)))
    max_lanes = max(128, budget_block // (C * 4))
    if n_batch < 2:                   # keep both v7x TensorCores busy
        max_lanes = min(max_lanes, max(128, (H * Wh) // 2))
    for tH in range(H, 0, -1):
        if H % tH:
            continue
        lanes = tH * Wh
        if lanes <= max_lanes and (lanes % 128 == 0 or tH == H):
            return tH
    # No 128-aligned divisor tile fits the budget; fall back to the full extent
    # (always a legal BlockSpec) only if it is VMEM-feasible.
    # TODO(synk): add an H-padding path (pad rows compute independent garbage)
    # so oddly-shaped large inputs still get aligned tiles instead of this.
    if H * Wh * C * 4 * _LIVE_FACTOR > vmem_bytes:
        raise ValueError("no VMEM-feasible 128-aligned H tile for "
                         f"H={H}, W/2={Wh}, C={C}")
    return H


def lifting_scheme_forward(x, params, *, horizontal=True, modified=True,
                           k_size=4, matmul_dtype=None):
    """Pallas implementation of LiftingScheme.forward (splitting=True)."""
    if not horizontal:
        # TODO(synk): fold this transpose into the kernel (convolve along the
        # sublane axis) to avoid two full HBM transpose passes in the vertical
        # case; kept as wrapper glue since the module is used horizontally here.
        x = jnp.swapaxes(x, 2, 3)
    N, C, H, W = x.shape
    if W % 2:
        raise ValueError("lifting axis length must be even")
    Wh = W // 2
    if Wh <= k_size // 2:
        raise ValueError("reflection padding requires W//2 > k_size//2")

    if matmul_dtype is None:
        # bf16 MXU operands only pay off (and stay accurate) for larger channel
        # contractions; small C stays f32. Elementwise math is f32 either way.
        matmul_dtype = jnp.bfloat16 if C >= 16 else jnp.float32

    # Even/odd split (XLA strided slice) + free contiguous flatten to (N,C,H*Wh).
    # TODO(synk): fold the stride-2 deinterleave into the kernel to save ~2 HBM
    # passes; Mosaic has no reliable lane-stride-2 load / lane-compaction
    # primitive, so it remains wrapper glue for robustness.
    xe = x[:, :, :, 0::2].reshape(N, C, H * Wh)
    xo = x[:, :, :, 1::2].reshape(N, C, H * Wh)

    def prep(w1, b1, w2, b2):
        # Conv2d(C, 2C, (1,k)) weight (2C, C, k) -> one (2C, C) matrix per tap.
        w1t = jnp.transpose(w1, (2, 0, 1)).astype(matmul_dtype)
        return (w1t, b1.reshape(-1, 1).astype(jnp.float32),
                w2.astype(matmul_dtype), b2.reshape(-1, 1).astype(jnp.float32))

    pU, pP = prep(*params["U"]), prep(*params["P"])

    vmem_bytes = _vmem_capacity_bytes()
    tH = _pick_h_tile(H, Wh, C, vmem_bytes, N)
    Lb = tH * Wh
    grid = (N, H // tH)

    block_bytes = C * Lb * 4
    vmem_limit = int(min(max(block_bytes * (_LIVE_FACTOR + 4) + (8 << 20), 32 << 20),
                         max(32 << 20, vmem_bytes * 3 // 4)))

    plan, cols = _reflection_plan(Wh, k_size)

    data_spec = pl.BlockSpec((1, C, Lb), lambda n, h: (n, 0, h))

    def _rep(ndim):
        return lambda n, h: (0,) * ndim

    w_specs = [pl.BlockSpec(p.shape, _rep(p.ndim)) for p in (*pU, *pP)]

    kern = functools.partial(_lifting_kernel, wh=Wh, plan=plan, cols=cols,
                             modified=modified, mm_dtype=matmul_dtype)
    c, d = pl.pallas_call(
        kern,
        out_shape=(jax.ShapeDtypeStruct((N, C, H * Wh), x.dtype),
                   jax.ShapeDtypeStruct((N, C, H * Wh), x.dtype)),
        grid=grid,
        in_specs=[data_spec, data_spec] + w_specs,
        out_specs=(data_spec, data_spec),
        compiler_params=pltpu.CompilerParams(
            dimension_semantics=("parallel", "parallel"),
            vmem_limit_bytes=vmem_limit),
    )(xe, xo, *pU, *pP)

    c = c.reshape(N, C, H, Wh)
    d = d.reshape(N, C, H, Wh)
    if not horizontal:
        c = jnp.swapaxes(c, 2, 3)
        d = jnp.swapaxes(d, 2, 3)
    return c, d


# ------------------------- pure-JAX reference ----------------------------------
def _branch_ref(inp, w1, b1, w2, b2, k_size):
    pad_l, pad_r = k_size // 2, k_size - 1 - k_size // 2
    xp = jnp.pad(inp, ((0, 0), (0, 0), (0, 0), (pad_l, pad_r)), mode="reflect")
    y1 = jax.lax.conv_general_dilated(
        xp, w1[:, :, None, :], (1, 1), "VALID",
        dimension_numbers=("NCHW", "OIHW", "NCHW"))
    y1 = jax.nn.relu(y1 + b1.reshape(1, -1, 1, 1))
    y2 = jnp.einsum("oc,nchw->nohw", w2, y1) + b2.reshape(1, -1, 1, 1)
    return jnp.tanh(y2)


if __name__ == "__main__":
    key = jax.random.PRNGKey(0)
    N, C, H, W = 2, 4, 16, 16
    k_size = 4
    C2 = 2 * C                      # size_hidden = 2 (simple_lifting=False)
    keys = jax.random.split(key, 10)
    x = jax.random.normal(keys[0], (N, C, H, W), jnp.float32)

    def conv_init(k, shape, fan_in):
        bound = 1.0 / (fan_in ** 0.5)
        return jax.random.uniform(k, shape, jnp.float32, -bound, bound)

    # Deterministic synthetic parameters (shapes follow the nn.Module __init__).
    params = {
        "P": (conv_init(keys[1], (C2, C, k_size), C * k_size),  # Conv2d(C,2C,(1,k)) w
              conv_init(keys[2], (C2, 1), C * k_size),          # its bias
              conv_init(keys[3], (C, C2), C2),                  # Conv2d(2C,C,(1,1)) w
              conv_init(keys[4], (C, 1), C2)),                  # its bias
        "U": (conv_init(keys[5], (C2, C, k_size), C * k_size),
              conv_init(keys[6], (C2, 1), C * k_size),
              conv_init(keys[7], (C, C2), C2),
              conv_init(keys[8], (C, 1), C2)),
    }

    fwd = jax.jit(functools.partial(lifting_scheme_forward,
                                    horizontal=True, modified=True,
                                    k_size=k_size))

    def reference(xin):
        x_even = xin[:, :, :, ::2]
        x_odd = xin[:, :, :, 1::2]
        c_ref = x_even + _branch_ref(x_odd, *params["U"], k_size)
        d_ref = x_odd - _branch_ref(c_ref, *params["P"], k_size)
        return c_ref, d_ref

    # Case 1: module-spec shape (single full-extent tile per batch element).
    c, d = jax.block_until_ready(fwd(x, params))
    c_ref, d_ref = reference(x)
    assert c.shape == (N, C, H, W // 2) and d.shape == (N, C, H, W // 2)
    assert jnp.allclose(c, c_ref, atol=5e-4, rtol=5e-4)
    assert jnp.allclose(d, d_ref, atol=5e-4, rtol=5e-4)

    # Case 2: N == 1 exercises the multi-H-tile grid path (2 balanced tiles).
    x2 = jax.random.normal(keys[9], (1, C, 64, 32), jnp.float32)
    c2, d2 = jax.block_until_ready(fwd(x2, params))
    c2_ref, d2_ref = reference(x2)
    assert jnp.allclose(c2, c2_ref, atol=5e-4, rtol=5e-4)
    assert jnp.allclose(d2, d2_ref, atol=5e-4, rtol=5e-4)

    print("KERNEL_OK")
</pallas_src>

<mosaic_0001>
module attributes {stable_mosaic.version = 11 : i64} {
  func.func @_lifting_kernel(%arg0: i32, %arg1: i32, %arg2: memref<1x4x128xf32, #tpu.memory_space<vmem>>, %arg3: memref<1x4x128xf32, #tpu.memory_space<vmem>>, %arg4: memref<4x8x4xf32, #tpu.memory_space<vmem>>, %arg5: memref<8x1xf32, #tpu.memory_space<vmem>>, %arg6: memref<4x8xf32, #tpu.memory_space<vmem>>, %arg7: memref<4x1xf32, #tpu.memory_space<vmem>>, %arg8: memref<4x8x4xf32, #tpu.memory_space<vmem>>, %arg9: memref<8x1xf32, #tpu.memory_space<vmem>>, %arg10: memref<4x8xf32, #tpu.memory_space<vmem>>, %arg11: memref<4x1xf32, #tpu.memory_space<vmem>>, %arg12: memref<1x4x128xf32, #tpu.memory_space<vmem>>, %arg13: memref<1x4x128xf32, #tpu.memory_space<vmem>>) attributes {dimension_semantics = [#tpu.dimension_semantics<parallel>, #tpu.dimension_semantics<parallel>], iteration_bounds = array<i64: 2, 1>, scalar_prefetch = 0 : i64, scratch_operands = 0 : i64, tpu.core_type = #tpu.core_type<tc>, window_params = [{transform_indices = @transform_0, window_bounds = array<i64: 1, 4, 128>}, {transform_indices = @transform_1, window_bounds = array<i64: 1, 4, 128>}, {pipeline_mode = #tpu.pipeline_mode<synchronous>, transform_indices = @transform_2, window_bounds = array<i64: 4, 8, 4>}, {pipeline_mode = #tpu.pipeline_mode<synchronous>, transform_indices = @transform_3, window_bounds = array<i64: 8, 1>}, {pipeline_mode = #tpu.pipeline_mode<synchronous>, transform_indices = @transform_4, window_bounds = array<i64: 4, 8>}, {pipeline_mode = #tpu.pipeline_mode<synchronous>, transform_indices = @transform_5, window_bounds = array<i64: 4, 1>}, {pipeline_mode = #tpu.pipeline_mode<synchronous>, transform_indices = @transform_6, window_bounds = array<i64: 4, 8, 4>}, {pipeline_mode = #tpu.pipeline_mode<synchronous>, transform_indices = @transform_7, window_bounds = array<i64: 8, 1>}, {pipeline_mode = #tpu.pipeline_mode<synchronous>, transform_indices = @transform_8, window_bounds = array<i64: 4, 8>}, {pipeline_mode = #tpu.pipeline_mode<synchronous>, transform_indices = @transform_9, window_bounds = array<i64: 4, 1>}, {transform_indices = @transform_10, window_bounds = array<i64: 1, 4, 128>}, {transform_indices = @transform_11, window_bounds = array<i64: 1, 4, 128>}]} {
    %c0 = arith.constant 0 : index
    %c0_0 = arith.constant 0 : index
    %c0_1 = arith.constant 0 : index
    %0 = vector.load %arg2[%c0, %c0_0, %c0_1] : memref<1x4x128xf32, #tpu.memory_space<vmem>>, vector<1x4x128xf32>
    %1 = vector.shape_cast %0 : vector<1x4x128xf32> to vector<4x128xf32>
    %c0_2 = arith.constant 0 : index
    %c0_3 = arith.constant 0 : index
    %c0_4 = arith.constant 0 : index
    %2 = vector.load %arg3[%c0_2, %c0_3, %c0_4] : memref<1x4x128xf32, #tpu.memory_space<vmem>>, vector<1x4x128xf32>
    %3 = vector.shape_cast %2 : vector<1x4x128xf32> to vector<4x128xf32>
    %4 = tpu.iota {dimensions = array<i32: 1>} : vector<4x128xi32>
    %c8_i32 = arith.constant 8 : i32
    %c0_i32 = arith.constant 0 : i32
    %5 = arith.cmpi eq, %c8_i32, %c0_i32 : i32
    %c1_i32 = arith.constant 1 : i32
    %6 = arith.select %5, %c1_i32, %c8_i32 : i32
    %7 = vector.broadcast %6 : i32 to vector<4x128xi32>
    %8 = arith.remsi %4, %7 : vector<4x128xi32>
    %c0_i32_5 = arith.constant 0 : i32
    %9 = vector.broadcast %c0_i32_5 : i32 to vector<4x128xi32>
    %10 = arith.cmpi ne, %8, %9 : vector<4x128xi32>
    %c0_i32_6 = arith.constant 0 : i32
    %11 = vector.broadcast %c0_i32_6 : i32 to vector<4x128xi32>
    %12 = arith.cmpi slt, %8, %11 : vector<4x128xi32>
    %c0_i32_7 = arith.constant 0 : i32
    %13 = arith.cmpi slt, %6, %c0_i32_7 : i32
    %14 = vector.broadcast %13 : i1 to vector<4x128xi1>
    %15 = vector.broadcast %14 : vector<4x128xi1> to vector<4x128xi1>
    %16 = arith.xori %12, %15 : vector<4x128xi1>
    %17 = arith.andi %16, %10 : vector<4x128xi1>
    %18 = vector.broadcast %6 : i32 to vector<4x128xi32>
    %19 = arith.addi %8, %18 : vector<4x128xi32>
    %20 = arith.select %17, %19, %8 : vector<4x128xi1>, vector<4x128xi32>
    %c0_i32_8 = arith.constant 0 : i32
    %21 = vector.broadcast %c0_i32_8 : i32 to vector<4x128xi32>
    %22 = arith.cmpi eq, %20, %21 : vector<4x128xi32>
    %c1_i32_9 = arith.constant 1 : i32
    %23 = vector.broadcast %c1_i32_9 : i32 to vector<4x128xi32>
    %24 = arith.cmpi eq, %20, %23 : vector<4x128xi32>
    %c7_i32 = arith.constant 7 : i32
    %25 = vector.broadcast %c7_i32 : i32 to vector<4x128xi32>
    %26 = arith.cmpi eq, %20, %25 : vector<4x128xi32>
    %c0_10 = arith.constant 0 : index
    %c0_11 = arith.constant 0 : index
    %c0_12 = arith.constant 0 : index
    %27 = vector.load %arg4[%c0_10, %c0_11, %c0_12] : memref<4x8x4xf32, #tpu.memory_space<vmem>>, vector<4x8x4xf32>
    %c0_13 = arith.constant 0 : index
    %c0_14 = arith.constant 0 : index
    %28 = vector.load %arg5[%c0_13, %c0_14] : memref<8x1xf32, #tpu.memory_space<vmem>>, vector<8x1xf32>
    %c0_15 = arith.constant 0 : index
    %c0_16 = arith.constant 0 : index
    %29 = vector.load %arg6[%c0_15, %c0_16] : memref<4x8xf32, #tpu.memory_space<vmem>>, vector<4x8xf32>
    %c0_17 = arith.constant 0 : index
    %c0_18 = arith.constant 0 : index
    %30 = vector.load %arg7[%c0_17, %c0_18] : memref<4x1xf32, #tpu.memory_space<vmem>>, vector<4x1xf32>
    %c0_19 = arith.constant 0 : index
    %c0_20 = arith.constant 0 : index
    %c0_21 = arith.constant 0 : index
    %31 = vector.load %arg8[%c0_19, %c0_20, %c0_21] : memref<4x8x4xf32, #tpu.memory_space<vmem>>, vector<4x8x4xf32>
    %c0_22 = arith.constant 0 : index
    %c0_23 = arith.constant 0 : index
    %32 = vector.load %arg9[%c0_22, %c0_23] : memref<8x1xf32, #tpu.memory_space<vmem>>, vector<8x1xf32>
    %c0_24 = arith.constant 0 : index
    %c0_25 = arith.constant 0 : index
    %33 = vector.load %arg10[%c0_24, %c0_25] : memref<4x8xf32, #tpu.memory_space<vmem>>, vector<4x8xf32>
    %c0_26 = arith.constant 0 : index
    %c0_27 = arith.constant 0 : index
    %34 = vector.load %arg11[%c0_26, %c0_27] : memref<4x1xf32, #tpu.memory_space<vmem>>, vector<4x1xf32>
    %c2_i32 = arith.constant 2 : i32
    %35 = tpu.dynamic_rotate %3 by %c2_i32 dim 1 : vector<4x128xf32>, i32 -> vector<4x128xf32>
    %c126_i32 = arith.constant 126 : i32
    %36 = tpu.dynamic_rotate %3 by %c126_i32 dim 1 : vector<4x128xf32>, i32 -> vector<4x128xf32>
    %37 = arith.select %22, %36, %35 : vector<4x128xi1>, vector<4x128xf32>
    %38 = arith.select %24, %3, %37 : vector<4x128xi1>, vector<4x128xf32>
    %39 = vector.extract_strided_slice %27 {offsets = [0, 0, 0], sizes = [1, 8, 4], strides = [1, 1, 1]} : vector<4x8x4xf32> to vector<1x8x4xf32>
    %40 = vector.shape_cast %39 : vector<1x8x4xf32> to vector<8x4xf32>
    %cst = arith.constant dense<0.000000e+00> : vector<8x128xf32>
    %41 = tpu.matmul %40, %38, %cst {dimension_numbers = #tpu.dot_dimension_numbers<[1], [0], [0], [1], [0, 0, 1, 1], [], []>} : vector<8x4xf32>, vector<4x128xf32>, vector<8x128xf32> -> vector<8x128xf32>
    %c1_i32_28 = arith.constant 1 : i32
    %42 = tpu.dynamic_rotate %3 by %c1_i32_28 dim 1 : vector<4x128xf32>, i32 -> vector<4x128xf32>
    %c127_i32 = arith.constant 127 : i32
    %43 = tpu.dynamic_rotate %3 by %c127_i32 dim 1 : vector<4x128xf32>, i32 -> vector<4x128xf32>
    %44 = arith.select %22, %43, %42 : vector<4x128xi1>, vector<4x128xf32>
    %45 = vector.extract_strided_slice %27 {offsets = [1, 0, 0], sizes = [1, 8, 4], strides = [1, 1, 1]} : vector<4x8x4xf32> to vector<1x8x4xf32>
    %46 = vector.shape_cast %45 : vector<1x8x4xf32> to vector<8x4xf32>
    %cst_29 = arith.constant dense<0.000000e+00> : vector<8x128xf32>
    %47 = tpu.matmul %46, %44, %cst_29 {dimension_numbers = #tpu.dot_dimension_numbers<[1], [0], [0], [1], [0, 0, 1, 1], [], []>} : vector<8x4xf32>, vector<4x128xf32>, vector<8x128xf32> -> vector<8x128xf32>
    %48 = arith.addf %41, %47 : vector<8x128xf32>
    %49 = vector.extract_strided_slice %27 {offsets = [2, 0, 0], sizes = [1, 8, 4], strides = [1, 1, 1]} : vector<4x8x4xf32> to vector<1x8x4xf32>
    %50 = vector.shape_cast %49 : vector<1x8x4xf32> to vector<8x4xf32>
    %cst_30 = arith.constant dense<0.000000e+00> : vector<8x128xf32>
    %51 = tpu.matmul %50, %3, %cst_30 {dimension_numbers = #tpu.dot_dimension_numbers<[1], [0], [0], [1], [0, 0, 1, 1], [], []>} : vector<8x4xf32>, vector<4x128xf32>, vector<8x128xf32> -> vector<8x128xf32>
    %52 = arith.addf %48, %51 : vector<8x128xf32>
    %53 = arith.select %26, %42, %43 : vector<4x128xi1>, vector<4x128xf32>
    %54 = vector.extract_strided_slice %27 {offsets = [3, 0, 0], sizes = [1, 8, 4], strides = [1, 1, 1]} : vector<4x8x4xf32> to vector<1x8x4xf32>
    %55 = vector.shape_cast %54 : vector<1x8x4xf32> to vector<8x4xf32>
    %cst_31 = arith.constant dense<0.000000e+00> : vector<8x128xf32>
    %56 = tpu.matmul %55, %53, %cst_31 {dimension_numbers = #tpu.dot_dimension_numbers<[1], [0], [0], [1], [0, 0, 1, 1], [], []>} : vector<8x4xf32>, vector<4x128xf32>, vector<8x128xf32> -> vector<8x128xf32>
    %57 = arith.addf %52, %56 : vector<8x128xf32>
    %58 = vector.broadcast %28 : vector<8x1xf32> to vector<8x128xf32>
    %59 = arith.addf %57, %58 : vector<8x128xf32>
    %cst_32 = arith.constant 0.000000e+00 : f32
    %60 = vector.broadcast %cst_32 : f32 to vector<8x128xf32>
    %61 = arith.maximumf %59, %60 : vector<8x128xf32>
    %cst_33 = arith.constant dense<0.000000e+00> : vector<4x128xf32>
    %62 = tpu.matmul %29, %61, %cst_33 {dimension_numbers = #tpu.dot_dimension_numbers<[1], [0], [0], [1], [0, 0, 1, 1], [], []>} : vector<4x8xf32>, vector<8x128xf32>, vector<4x128xf32> -> vector<4x128xf32>
    %63 = vector.broadcast %30 : vector<4x1xf32> to vector<4x128xf32>
    %64 = arith.addf %62, %63 : vector<4x128xf32>
    %65 = math.tanh %64 : vector<4x128xf32>
    %66 = arith.addf %1, %65 : vector<4x128xf32>
    %c2_i32_34 = arith.constant 2 : i32
    %67 = tpu.dynamic_rotate %66 by %c2_i32_34 dim 1 : vector<4x128xf32>, i32 -> vector<4x128xf32>
    %c126_i32_35 = arith.constant 126 : i32
    %68 = tpu.dynamic_rotate %66 by %c126_i32_35 dim 1 : vector<4x128xf32>, i32 -> vector<4x128xf32>
    %69 = arith.select %22, %68, %67 : vector<4x128xi1>, vector<4x128xf32>
    %70 = arith.select %24, %66, %69 : vector<4x128xi1>, vector<4x128xf32>
    %71 = vector.extract_strided_slice %31 {offsets = [0, 0, 0], sizes = [1, 8, 4], strides = [1, 1, 1]} : vector<4x8x4xf32> to vector<1x8x4xf32>
    %72 = vector.shape_cast %71 : vector<1x8x4xf32> to vector<8x4xf32>
    %cst_36 = arith.constant dense<0.000000e+00> : vector<8x128xf32>
    %73 = tpu.matmul %72, %70, %cst_36 {dimension_numbers = #tpu.dot_dimension_numbers<[1], [0], [0], [1], [0, 0, 1, 1], [], []>} : vector<8x4xf32>, vector<4x128xf32>, vector<8x128xf32> -> vector<8x128xf32>
    %c1_i32_37 = arith.constant 1 : i32
    %74 = tpu.dynamic_rotate %66 by %c1_i32_37 dim 1 : vector<4x128xf32>, i32 -> vector<4x128xf32>
    %c127_i32_38 = arith.constant 127 : i32
    %75 = tpu.dynamic_rotate %66 by %c127_i32_38 dim 1 : vector<4x128xf32>, i32 -> vector<4x128xf32>
    %76 = arith.select %22, %75, %74 : vector<4x128xi1>, vector<4x128xf32>
    %77 = vector.extract_strided_slice %31 {offsets = [1, 0, 0], sizes = [1, 8, 4], strides = [1, 1, 1]} : vector<4x8x4xf32> to vector<1x8x4xf32>
    %78 = vector.shape_cast %77 : vector<1x8x4xf32> to vector<8x4xf32>
    %cst_39 = arith.constant dense<0.000000e+00> : vector<8x128xf32>
    %79 = tpu.matmul %78, %76, %cst_39 {dimension_numbers = #tpu.dot_dimension_numbers<[1], [0], [0], [1], [0, 0, 1, 1], [], []>} : vector<8x4xf32>, vector<4x128xf32>, vector<8x128xf32> -> vector<8x128xf32>
    %80 = arith.addf %73, %79 : vector<8x128xf32>
    %81 = vector.extract_strided_slice %31 {offsets = [2, 0, 0], sizes = [1, 8, 4], strides = [1, 1, 1]} : vector<4x8x4xf32> to vector<1x8x4xf32>
    %82 = vector.shape_cast %81 : vector<1x8x4xf32> to vector<8x4xf32>
    %cst_40 = arith.constant dense<0.000000e+00> : vector<8x128xf32>
    %83 = tpu.matmul %82, %66, %cst_40 {dimension_numbers = #tpu.dot_dimension_numbers<[1], [0], [0], [1], [0, 0, 1, 1], [], []>} : vector<8x4xf32>, vector<4x128xf32>, vector<8x128xf32> -> vector<8x128xf32>
    %84 = arith.addf %80, %83 : vector<8x128xf32>
    %85 = arith.select %26, %74, %75 : vector<4x128xi1>, vector<4x128xf32>
    %86 = vector.extract_strided_slice %31 {offsets = [3, 0, 0], sizes = [1, 8, 4], strides = [1, 1, 1]} : vector<4x8x4xf32> to vector<1x8x4xf32>
    %87 = vector.shape_cast %86 : vector<1x8x4xf32> to vector<8x4xf32>
    %cst_41 = arith.constant dense<0.000000e+00> : vector<8x128xf32>
    %88 = tpu.matmul %87, %85, %cst_41 {dimension_numbers = #tpu.dot_dimension_numbers<[1], [0], [0], [1], [0, 0, 1, 1], [], []>} : vector<8x4xf32>, vector<4x128xf32>, vector<8x128xf32> -> vector<8x128xf32>
    %89 = arith.addf %84, %88 : vector<8x128xf32>
    %90 = vector.broadcast %32 : vector<8x1xf32> to vector<8x128xf32>
    %91 = arith.addf %89, %90 : vector<8x128xf32>
    %cst_42 = arith.constant 0.000000e+00 : f32
    %92 = vector.broadcast %cst_42 : f32 to vector<8x128xf32>
    %93 = arith.maximumf %91, %92 : vector<8x128xf32>
    %cst_43 = arith.constant dense<0.000000e+00> : vector<4x128xf32>
    %94 = tpu.matmul %33, %93, %cst_43 {dimension_numbers = #tpu.dot_dimension_numbers<[1], [0], [0], [1], [0, 0, 1, 1], [], []>} : vector<4x8xf32>, vector<8x128xf32>, vector<4x128xf32> -> vector<4x128xf32>
    %95 = vector.broadcast %34 : vector<4x1xf32> to vector<4x128xf32>
    %96 = arith.addf %94, %95 : vector<4x128xf32>
    %97 = math.tanh %96 : vector<4x128xf32>
    %98 = arith.subf %3, %97 : vector<4x128xf32>
    %c0_44 = arith.constant 0 : index
    %c0_45 = arith.constant 0 : index
    %c0_46 = arith.constant 0 : index
    %99 = vector.load %arg12[%c0_44, %c0_45, %c0_46] : memref<1x4x128xf32, #tpu.memory_space<vmem>>, vector<1x4x128xf32>
    %100 = vector.shape_cast %99 : vector<1x4x128xf32> to vector<4x128xf32>
    %101 = vector.shape_cast %66 : vector<4x128xf32> to vector<1x4x128xf32>
    tpu.vector_store %arg12[%c0_44, %c0_45, %c0_46], %101 {strides = array<i32>} : memref<1x4x128xf32, #tpu.memory_space<vmem>>, vector<1x4x128xf32>,
    %c0_47 = arith.constant 0 : index
    %c0_48 = arith.constant 0 : index
    %c0_49 = arith.constant 0 : index
    %102 = vector.load %arg13[%c0_47, %c0_48, %c0_49] : memref<1x4x128xf32, #tpu.memory_space<vmem>>, vector<1x4x128xf32>
    %103 = vector.shape_cast %102 : vector<1x4x128xf32> to vector<4x128xf32>
    %104 = vector.shape_cast %98 : vector<4x128xf32> to vector<1x4x128xf32>
    tpu.vector_store %arg13[%c0_47, %c0_48, %c0_49], %104 {strides = array<i32>} : memref<1x4x128xf32, #tpu.memory_space<vmem>>, vector<1x4x128xf32>,
    return
  }
  func.func @transform_0(%arg0: i32, %arg1: i32) -> (i32, i32, i32) {
    %c0_i32 = arith.constant 0 : i32
    %c0_i32_0 = arith.constant 0 : i32
    return %arg0, %c0_i32, %arg1 : i32, i32, i32
  }
  func.func @transform_1(%arg0: i32, %arg1: i32) -> (i32, i32, i32) {
    %c0_i32 = arith.constant 0 : i32
    %c0_i32_0 = arith.constant 0 : i32
    return %arg0, %c0_i32, %arg1 : i32, i32, i32
  }
  func.func @transform_2(%arg0: i32, %arg1: i32) -> (i32, i32, i32) {
    %c0_i32 = arith.constant 0 : i32
    %c0_i32_0 = arith.constant 0 : i32
    %c0_i32_1 = arith.constant 0 : i32
    %c0_i32_2 = arith.constant 0 : i32
    return %c0_i32, %c0_i32_0, %c0_i32_1 : i32, i32, i32
  }
  func.func @transform_3(%arg0: i32, %arg1: i32) -> (i32, i32) {
    %c0_i32 = arith.constant 0 : i32
    %c0_i32_0 = arith.constant 0 : i32
    %c0_i32_1 = arith.constant 0 : i32
    return %c0_i32, %c0_i32_0 : i32, i32
  }
  func.func @transform_4(%arg0: i32, %arg1: i32) -> (i32, i32) {
    %c0_i32 = arith.constant 0 : i32
    %c0_i32_0 = arith.constant 0 : i32
    %c0_i32_1 = arith.constant 0 : i32
    return %c0_i32, %c0_i32_0 : i32, i32
  }
  func.func @transform_5(%arg0: i32, %arg1: i32) -> (i32, i32) {
    %c0_i32 = arith.constant 0 : i32
    %c0_i32_0 = arith.constant 0 : i32
    %c0_i32_1 = arith.constant 0 : i32
    return %c0_i32, %c0_i32_0 : i32, i32
  }
  func.func @transform_6(%arg0: i32, %arg1: i32) -> (i32, i32, i32) {
    %c0_i32 = arith.constant 0 : i32
    %c0_i32_0 = arith.constant 0 : i32
    %c0_i32_1 = arith.constant 0 : i32
    %c0_i32_2 = arith.constant 0 : i32
    return %c0_i32, %c0_i32_0, %c0_i32_1 : i32, i32, i32
  }
  func.func @transform_7(%arg0: i32, %arg1: i32) -> (i32, i32) {
    %c0_i32 = arith.constant 0 : i32
    %c0_i32_0 = arith.constant 0 : i32
    %c0_i32_1 = arith.constant 0 : i32
    return %c0_i32, %c0_i32_0 : i32, i32
  }
  func.func @transform_8(%arg0: i32, %arg1: i32) -> (i32, i32) {
    %c0_i32 = arith.constant 0 : i32
    %c0_i32_0 = arith.constant 0 : i32
    %c0_i32_1 = arith.constant 0 : i32
    return %c0_i32, %c0_i32_0 : i32, i32
  }
  func.func @transform_9(%arg0: i32, %arg1: i32) -> (i32, i32) {
    %c0_i32 = arith.constant 0 : i32
    %c0_i32_0 = arith.constant 0 : i32
    %c0_i32_1 = arith.constant 0 : i32
    return %c0_i32, %c0_i32_0 : i32, i32
  }
  func.func @transform_10(%arg0: i32, %arg1: i32) -> (i32, i32, i32) {
    %c0_i32 = arith.constant 0 : i32
    %c0_i32_0 = arith.constant 0 : i32
    return %arg0, %c0_i32, %arg1 : i32, i32, i32
  }
  func.func @transform_11(%arg0: i32, %arg1: i32) -> (i32, i32, i32) {
    %c0_i32 = arith.constant 0 : i32
    %c0_i32_0 = arith.constant 0 : i32
    return %arg0, %c0_i32, %arg1 : i32, i32, i32
  }
}

</mosaic_0001>

<llo_original>
// kernel: lifting_scheme_forward.1
$region0: #{lifting_scheme_forward.1}
  #allocation0 [shape = 'u32[]', space=smem, size = 0x4, offset = 0x4, fixed_abs, tag = 'smem constant byte address 0x4 - core index']
  #allocation1 [shape = 'u32[144,128]{1,0:T(1,128)}', space=vmem, size = 0x12000, scoped, tag = 'internal scratch']
  %s0 = inlined_call_operand.vmem [shape: f32[2,4,128], index: 0, kind: input, shape index: {}]
  %s1 = inlined_call_operand.vmem [shape: f32[2,4,128], index: 1, kind: input, shape index: {}]
  %s2 = inlined_call_operand.vmem [shape: f32[4,8,4], index: 2, kind: input, shape index: {}]
  %s3 = inlined_call_operand.vmem [shape: f32[8,1], index: 3, kind: input, shape index: {}]
  %s4 = inlined_call_operand.vmem [shape: f32[4,8], index: 4, kind: input, shape index: {}]
  %s5 = inlined_call_operand.vmem [shape: f32[4,1], index: 5, kind: input, shape index: {}]
  %s6 = inlined_call_operand.vmem [shape: f32[4,8,4], index: 6, kind: input, shape index: {}]
  %s7 = inlined_call_operand.vmem [shape: f32[8,1], index: 7, kind: input, shape index: {}]
  %s8 = inlined_call_operand.vmem [shape: f32[4,8], index: 8, kind: input, shape index: {}]
  %s9 = inlined_call_operand.vmem [shape: f32[4,1], index: 9, kind: input, shape index: {}]
  %s10 = inlined_call_operand.vmem [shape: f32[2,4,128], index: 10, kind: output, shape index: {0}]
  %s11 = inlined_call_operand.vmem [shape: f32[2,4,128], index: 11, kind: output, shape index: {1}]
  %12 = xla_tuple %s10, %s11
  %s13 = sld [smem:[#allocation0]]
  $region81: #{lifting_scheme_forward.1} parent=0
    _
  %s15 = ssub.s32 1, %s13
  %s16 = scalar_select 0, %s15, %s13
  loop: start=0, step=1, limit=4
  $region2: #{lifting_scheme_forward.1} parent=0 // loop_pre_header
    _
  $region3: #{lifting_scheme_forward.1} parent=0 // loop_header
    %s18 = sphi 0, %s22
    %p19 = scmp.ge.s32.totalorder %s18, 4
    %s25 = sphi 0, %s37
    %s26 = sphi 0, %s33
    %s27 = sphi 0, %s25
    %s28 = sphi 0, %s26
    %s29 = sphi 0, %s27
    %s30 = sphi 0, %s28
    %s42 = sphi 0, %s44
    %s45 = sphi 0, %s42
    %s46 = sphi 0, %s45
    %s62 = sphi 0, %s46
    %s70 = sphi 0, %s72
    %s73 = sphi 0, %s70
    %s74 = sphi 0, %s73
    %s90 = sphi 0, %s74
    %s94 = sphi 0, %s94
    %s96 = sphi 0, %s94
    %s97 = sphi 0, %s96
    %s111 = sphi 0, %s97
    %s115 = sphi 0, %s115
    %s117 = sphi 0, %s115
    %s118 = sphi 0, %s117
    %s132 = sphi 0, %s118
    %s136 = sphi 0, %s136
    %s138 = sphi 0, %s136
    %s139 = sphi 0, %s138
    %s153 = sphi 0, %s139
    %s157 = sphi 0, %s157
    %s159 = sphi 0, %s157
    %s160 = sphi 0, %s159
    %s174 = sphi 0, %s160
    %s178 = sphi 0, %s178
    %s180 = sphi 0, %s178
    %s181 = sphi 0, %s180
    %s195 = sphi 0, %s181
    %s199 = sphi 0, %s199
    %s201 = sphi 0, %s199
    %s202 = sphi 0, %s201
    %s216 = sphi 0, %s202
    %s220 = sphi 0, %s220
    %s222 = sphi 0, %s220
    %s223 = sphi 0, %s222
    %s237 = sphi 0, %s223
    %s241 = sphi 0, %s241
    %s243 = sphi 0, %s241
    %s244 = sphi 0, %s243
    %s258 = sphi 0, %s244
    %s266 = sphi 0, %s268
    %s269 = sphi 0, %s266
    %s270 = sphi 0, %s269
    %s286 = sphi 0, %s270
    %s294 = sphi 0, %s296
    %s297 = sphi 0, %s294
    %s298 = sphi 0, %s297
    %s314 = sphi 0, %s298
  $region4: #{lifting_scheme_forward.1} parent=0 // loop_header_branch
    %21 = sbr.rel (%p19) target = $region8
  $region5: #{lifting_scheme_forward.1} parent=0 // loop_body
    %s23 = ssub.s32 %s18, 1
    %s24 = ssub.s32 %s18, 2
    %s31 = sadd.s32 1, %s26
    %p32 = scmp.ge.s32.totalorder %s31, 1
    %s33 = scalar_select %p32, 0, %s31
    %s34 = sadd.s32 1, %s25
    %s35 = scalar_select %p32, %s34, %s25
    %p36 = scmp.ge.s32.totalorder %s35, 2
    %s37 = scalar_select %p36, 0, %s35
    %s38 = ssub.s32 %s25, %s37
    %s39 = ssub.s32 %s26, %s33
    %s40 = sor.u32 %s38, %s39
    %p41 = scmp.eq.s32.totalorder %s40, 0
    %s43 = sadd.s32 %s42, 1
    %s44 = scalar_select %p41, %s42, %s43
    %p47 = pneg %p41
    %p48 = scmp.eq.s32.totalorder %s18, 1
    %p49 = por %p47, %p48
    %p50 = scmp.ne.s32.totalorder %s42, %s45
    %p51 = scmp.eq.s32.totalorder %s18, 0
    %p52 = por %p50, %p51
    %p53 = scmp.ne.s32.totalorder %s42, %s45
    %p54 = scmp.eq.s32.totalorder %s23, 1
    %p55 = por %p53, %p54
    %p56 = scmp.ne.s32.totalorder %s45, %s46
    %p57 = scmp.eq.s32.totalorder %s23, 0
    %p58 = por %p56, %p57
    %p59 = scmp.ne.s32.totalorder %s45, %s46
    %p60 = scmp.eq.s32.totalorder %s24, 1
    %p61 = por %p59, %p60
    %p63 = scmp.ne.s32.totalorder %s46, %s62
    %p64 = scmp.eq.s32.totalorder %s24, 0
    %p65 = por %p63, %p64
    %s66 = ssub.s32 %s25, %s37
    %s67 = ssub.s32 %s26, %s33
    %s68 = sor.u32 %s66, %s67
    %p69 = scmp.eq.s32.totalorder %s68, 0
    %s71 = sadd.s32 %s70, 1
    %s72 = scalar_select %p69, %s70, %s71
    %p75 = pneg %p69
    %p76 = scmp.eq.s32.totalorder %s18, 1
    %p77 = por %p75, %p76
    %p78 = scmp.ne.s32.totalorder %s70, %s73
    %p79 = scmp.eq.s32.totalorder %s18, 0
    %p80 = por %p78, %p79
    %p81 = scmp.ne.s32.totalorder %s70, %s73
    %p82 = scmp.eq.s32.totalorder %s23, 1
    %p83 = por %p81, %p82
    %p84 = scmp.ne.s32.totalorder %s73, %s74
    %p85 = scmp.eq.s32.totalorder %s23, 0
    %p86 = por %p84, %p85
    %p87 = scmp.ne.s32.totalorder %s73, %s74
    %p88 = scmp.eq.s32.totalorder %s24, 1
    %p89 = por %p87, %p88
    %p91 = scmp.ne.s32.totalorder %s74, %s90
    %p92 = scmp.eq.s32.totalorder %s24, 0
    %p93 = por %p91, %p92
    %s95 = sadd.s32 %s94, 1
    %p98 = scmp.eq.s32.totalorder %s18, 1
    %p99 = scmp.ne.s32.totalorder %s94, %s96
    %p100 = scmp.eq.s32.totalorder %s18, 0
    %p101 = por %p99, %p100
    %p102 = scmp.ne.s32.totalorder %s94, %s96
    %p103 = scmp.eq.s32.totalorder %s23, 1
    %p104 = por %p102, %p103
    %p105 = scmp.ne.s32.totalorder %s96, %s97
    %p106 = scmp.eq.s32.totalorder %s23, 0
    %p107 = por %p105, %p106
    %p108 = scmp.ne.s32.totalorder %s96, %s97
    %p109 = scmp.eq.s32.totalorder %s24, 1
    %p110 = por %p108, %p109
    %p112 = scmp.ne.s32.totalorder %s97, %s111
    %p113 = scmp.eq.s32.totalorder %s24, 0
    %p114 = por %p112, %p113
    %s116 = sadd.s32 %s115, 1
    %p119 = scmp.eq.s32.totalorder %s18, 1
    %p120 = scmp.ne.s32.totalorder %s115, %s117
    %p121 = scmp.eq.s32.totalorder %s18, 0
    %p122 = por %p120, %p121
    %p123 = scmp.ne.s32.totalorder %s115, %s117
    %p124 = scmp.eq.s32.totalorder %s23, 1
    %p125 = por %p123, %p124
    %p126 = scmp.ne.s32.totalorder %s117, %s118
    %p127 = scmp.eq.s32.totalorder %s23, 0
    %p128 = por %p126, %p127
    %p129 = scmp.ne.s32.totalorder %s117, %s118
    %p130 = scmp.eq.s32.totalorder %s24, 1
    %p131 = por %p129, %p130
    %p133 = scmp.ne.s32.totalorder %s118, %s132
    %p134 = scmp.eq.s32.totalorder %s24, 0
    %p135 = por %p133, %p134
    %s137 = sadd.s32 %s136, 1
    %p140 = scmp.eq.s32.totalorder %s18, 1
    %p141 = scmp.ne.s32.totalorder %s136, %s138
    %p142 = scmp.eq.s32.totalorder %s18, 0
    %p143 = por %p141, %p142
    %p144 = scmp.ne.s32.totalorder %s136, %s138
    %p145 = scmp.eq.s32.totalorder %s23, 1
    %p146 = por %p144, %p145
    %p147 = scmp.ne.s32.totalorder %s138, %s139
    %p148 = scmp.eq.s32.totalorder %s23, 0
    %p149 = por %p147, %p148
    %p150 = scmp.ne.s32.totalorder %s138, %s139
    %p151 = scmp.eq.s32.totalorder %s24, 1
    %p152 = por %p150, %p151
    %p154 = scmp.ne.s32.totalorder %s139, %s153
    %p155 = scmp.eq.s32.totalorder %s24, 0
    %p156 = por %p154, %p155
    %s158 = sadd.s32 %s157, 1
    %p161 = scmp.eq.s32.totalorder %s18, 1
    %p162 = scmp.ne.s32.totalorder %s157, %s159
    %p163 = scmp.eq.s32.totalorder %s18, 0
    %p164 = por %p162, %p163
    %p165 = scmp.ne.s32.totalorder %s157, %s159
    %p166 = scmp.eq.s32.totalorder %s23, 1
    %p167 = por %p165, %p166
    %p168 = scmp.ne.s32.totalorder %s159, %s160
    %p169 = scmp.eq.s32.totalorder %s23, 0
    %p170 = por %p168, %p169
    %p171 = scmp.ne.s32.totalorder %s159, %s160
    %p172 = scmp.eq.s32.totalorder %s24, 1
    %p173 = por %p171, %p172
    %p175 = scmp.ne.s32.totalorder %s160, %s174
    %p176 = scmp.eq.s32.totalorder %s24, 0
    %p177 = por %p175, %p176
    %s179 = sadd.s32 %s178, 1
    %p182 = scmp.eq.s32.totalorder %s18, 1
    %p183 = scmp.ne.s32.totalorder %s178, %s180
    %p184 = scmp.eq.s32.totalorder %s18, 0
    %p185 = por %p183, %p184
    %p186 = scmp.ne.s32.totalorder %s178, %s180
    %p187 = scmp.eq.s32.totalorder %s23, 1
    %p188 = por %p186, %p187
    %p189 = scmp.ne.s32.totalorder %s180, %s181
    %p190 = scmp.eq.s32.totalorder %s23, 0
    %p191 = por %p189, %p190
    %p192 = scmp.ne.s32.totalorder %s180, %s181
    %p193 = scmp.eq.s32.totalorder %s24, 1
    %p194 = por %p192, %p193
    %p196 = scmp.ne.s32.totalorder %s181, %s195
    %p197 = scmp.eq.s32.totalorder %s24, 0
    %p198 = por %p196, %p197
    %s200 = sadd.s32 %s199, 1
    %p203 = scmp.eq.s32.totalorder %s18, 1
    %p204 = scmp.ne.s32.totalorder %s199, %s201
    %p205 = scmp.eq.s32.totalorder %s18, 0
    %p206 = por %p204, %p205
    %p207 = scmp.ne.s32.totalorder %s199, %s201
    %p208 = scmp.eq.s32.totalorder %s23, 1
    %p209 = por %p207, %p208
    %p210 = scmp.ne.s32.totalorder %s201, %s202
    %p211 = scmp.eq.s32.totalorder %s23, 0
    %p212 = por %p210, %p211
    %p213 = scmp.ne.s32.totalorder %s201, %s202
    %p214 = scmp.eq.s32.totalorder %s24, 1
    %p215 = por %p213, %p214
    %p217 = scmp.ne.s32.totalorder %s202, %s216
    %p218 = scmp.eq.s32.totalorder %s24, 0
    %p219 = por %p217, %p218
    %s221 = sadd.s32 %s220, 1
    %p224 = scmp.eq.s32.totalorder %s18, 1
    %p225 = scmp.ne.s32.totalorder %s220, %s222
    %p226 = scmp.eq.s32.totalorder %s18, 0
    %p227 = por %p225, %p226
    %p228 = scmp.ne.s32.totalorder %s220, %s222
    %p229 = scmp.eq.s32.totalorder %s23, 1
    %p230 = por %p228, %p229
    %p231 = scmp.ne.s32.totalorder %s222, %s223
    %p232 = scmp.eq.s32.totalorder %s23, 0
    %p233 = por %p231, %p232
    %p234 = scmp.ne.s32.totalorder %s222, %s223
    %p235 = scmp.eq.s32.totalorder %s24, 1
    %p236 = por %p234, %p235
    %p238 = scmp.ne.s32.totalorder %s223, %s237
    %p239 = scmp.eq.s32.totalorder %s24, 0
    %p240 = por %p238, %p239
    %s242 = sadd.s32 %s241, 1
    %p245 = scmp.eq.s32.totalorder %s18, 1
    %p246 = scmp.ne.s32.totalorder %s241, %s243
    %p247 = scmp.eq.s32.totalorder %s18, 0
    %p248 = por %p246, %p247
    %p249 = scmp.ne.s32.totalorder %s241, %s243
    %p250 = scmp.eq.s32.totalorder %s23, 1
    %p251 = por %p249, %p250
    %p252 = scmp.ne.s32.totalorder %s243, %s244
    %p253 = scmp.eq.s32.totalorder %s23, 0
    %p254 = por %p252, %p253
    %p255 = scmp.ne.s32.totalorder %s243, %s244
    %p256 = scmp.eq.s32.totalorder %s24, 1
    %p257 = por %p255, %p256
    %p259 = scmp.ne.s32.totalorder %s244, %s258
    %p260 = scmp.eq.s32.totalorder %s24, 0
    %p261 = por %p259, %p260
    %s262 = ssub.s32 %s25, %s37
    %s263 = ssub.s32 %s26, %s33
    %s264 = sor.u32 %s262, %s263
    %p265 = scmp.eq.s32.totalorder %s264, 0
    %s267 = sadd.s32 %s266, 1
    %s268 = scalar_select %p265, %s266, %s267
    %p271 = pneg %p265
    %p272 = scmp.eq.s32.totalorder %s18, 1
    %p273 = por %p271, %p272
    %p274 = scmp.ne.s32.totalorder %s266, %s269
    %p275 = scmp.eq.s32.totalorder %s18, 0
    %p276 = por %p274, %p275
    %p277 = scmp.ne.s32.totalorder %s266, %s269
    %p278 = scmp.eq.s32.totalorder %s23, 1
    %p279 = por %p277, %p278
    %p280 = scmp.ne.s32.totalorder %s269, %s270
    %p281 = scmp.eq.s32.totalorder %s23, 0
    %p282 = por %p280, %p281
    %p283 = scmp.ne.s32.totalorder %s269, %s270
    %p284 = scmp.eq.s32.totalorder %s24, 1
    %p285 = por %p283, %p284
    %p287 = scmp.ne.s32.totalorder %s270, %s286
    %p288 = scmp.eq.s32.totalorder %s24, 0
    %p289 = por %p287, %p288
    %s290 = ssub.s32 %s25, %s37
    %s291 = ssub.s32 %s26, %s33
    %s292 = sor.u32 %s290, %s291
    %p293 = scmp.eq.s32.totalorder %s292, 0
    %s295 = sadd.s32 %s294, 1
    %s296 = scalar_select %p293, %s294, %s295
    %p299 = pneg %p293
    %p300 = scmp.eq.s32.totalorder %s18, 1
    %p301 = por %p299, %p300
    %p302 = scmp.ne.s32.totalorder %s294, %s297
    %p303 = scmp.eq.s32.totalorder %s18, 0
    %p304 = por %p302, %p303
    %p305 = scmp.ne.s32.totalorder %s294, %s297
    %p306 = scmp.eq.s32.totalorder %s23, 1
    %p307 = por %p305, %p306
    %p308 = scmp.ne.s32.totalorder %s297, %s298
    %p309 = scmp.eq.s32.totalorder %s23, 0
    %p310 = por %p308, %p309
    %p311 = scmp.ne.s32.totalorder %s297, %s298
    %p312 = scmp.eq.s32.totalorder %s24, 1
    %p313 = por %p311, %p312
    %p315 = scmp.ne.s32.totalorder %s298, %s314
    %p316 = scmp.eq.s32.totalorder %s24, 0
    %p317 = por %p315, %p316
    %p318 = scmp.le.s32.totalorder 1, %s18
    %p319 = scmp.lt.s32.totalorder %s18, 3
    %p320 = pnand %p318, %p319
    %p321 = pneg %p320
    // Predicated region
    $region9: #{lifting_scheme_forward.1} parent=5 // pred_check
      _
    $region10: #{lifting_scheme_forward.1} parent=5 // pred_check_branch
      %323 = sbr.rel (%p320) target = $region12
    $region11: #{lifting_scheme_forward.1} parent=5 // pred_region
      %s324 = ssub.s32 %s18, 1
      // Predicated region
      $region13: #{lifting_scheme_forward.1} parent=11 // pred_check
        %p325 = pneg %p107
      $region14: #{lifting_scheme_forward.1} parent=11 // pred_check_branch
        %327 = sbr.rel (%p325) target = $region16
      $region15: #{lifting_scheme_forward.1} parent=11 // pred_region
        _
      $region16: #{lifting_scheme_forward.1} parent=11 // pred_fallthru
        _
      // Predicated region
      $region17: #{lifting_scheme_forward.1} parent=11 // pred_check
        %p328 = pneg %p128
      $region18: #{lifting_scheme_forward.1} parent=11 // pred_check_branch
        %330 = sbr.rel (%p328) target = $region20
      $region19: #{lifting_scheme_forward.1} parent=11 // pred_region
        _
      $region20: #{lifting_scheme_forward.1} parent=11 // pred_fallthru
        _
      // Predicated region
      $region21: #{lifting_scheme_forward.1} parent=11 // pred_check
        %p331 = pneg %p149
      $region22: #{lifting_scheme_forward.1} parent=11 // pred_check_branch
        %333 = sbr.rel (%p331) target = $region24
      $region23: #{lifting_scheme_forward.1} parent=11 // pred_region
        _
      $region24: #{lifting_scheme_forward.1} parent=11 // pred_fallthru
        _
      // Predicated region
      $region25: #{lifting_scheme_forward.1} parent=11 // pred_check
        %p334 = pneg %p170
      $region26: #{lifting_scheme_forward.1} parent=11 // pred_check_branch
        %336 = sbr.rel (%p334) target = $region28
      $region27: #{lifting_scheme_forward.1} parent=11 // pred_region
        _
      $region28: #{lifting_scheme_forward.1} parent=11 // pred_fallthru
        _
      // Predicated region
      $region29: #{lifting_scheme_forward.1} parent=11 // pred_check
        %p337 = pneg %p191
      $region30: #{lifting_scheme_forward.1} parent=11 // pred_check_branch
        %339 = sbr.rel (%p337) target = $region32
      $region31: #{lifting_scheme_forward.1} parent=11 // pred_region
        _
      $region32: #{lifting_scheme_forward.1} parent=11 // pred_fallthru
        _
      // Predicated region
      $region33: #{lifting_scheme_forward.1} parent=11 // pred_check
        %p340 = pneg %p212
      $region34: #{lifting_scheme_forward.1} parent=11 // pred_check_branch
        %342 = sbr.rel (%p340) target = $region36
      $region35: #{lifting_scheme_forward.1} parent=11 // pred_region
        _
      $region36: #{lifting_scheme_forward.1} parent=11 // pred_fallthru
        _
      // Predicated region
      $region37: #{lifting_scheme_forward.1} parent=11 // pred_check
        %p343 = pneg %p233
      $region38: #{lifting_scheme_forward.1} parent=11 // pred_check_branch
        %345 = sbr.rel (%p343) target = $region40
      $region39: #{lifting_scheme_forward.1} parent=11 // pred_region
        _
      $region40: #{lifting_scheme_forward.1} parent=11 // pred_fallthru
        _
      // Predicated region
      $region41: #{lifting_scheme_forward.1} parent=11 // pred_check
        %p346 = pneg %p254
      $region42: #{lifting_scheme_forward.1} parent=11 // pred_check_branch
        %348 = sbr.rel (%p346) target = $region44
      $region43: #{lifting_scheme_forward.1} parent=11 // pred_region
        _
      $region44: #{lifting_scheme_forward.1} parent=11 // pred_fallthru
        _
    $region12: #{lifting_scheme_forward.1} parent=5 // pred_fallthru
      _
    %p349 = scmp.lt.s32.totalorder %s18, 2
    // Predicated region
    $region45: #{lifting_scheme_forward.1} parent=5 // pred_check
      %p350 = pneg %p349
    $region46: #{lifting_scheme_forward.1} parent=5 // pred_check_branch
      %352 = sbr.rel (%p350) target = $region48
    $region47: #{lifting_scheme_forward.1} parent=5 // pred_region
      // Predicated region
      $region49: #{lifting_scheme_forward.1} parent=47 // pred_check
        %p353 = pneg %p52
      $region50: #{lifting_scheme_forward.1} parent=47 // pred_check_branch
        %355 = sbr.rel (%p353) target = $region52
      $region51: #{lifting_scheme_forward.1} parent=47 // pred_region
        %p356 = scmp.lt.s32.totalorder %s25, 1
        %s357 = scalar_select %p356, %s25, 1
        %p358 = scmp.lt.s32.totalorder %s26, 0
        %s359 = scalar_select %p358, %s26, 0
        %s360 = sadd.s32 %s359, %s357
        %s361 = smul.addr %s360, 4
        %s362 = scalar_lea.vmem %s0, %s361
      $region52: #{lifting_scheme_forward.1} parent=47 // pred_fallthru
        _
      // Predicated region
      $region53: #{lifting_scheme_forward.1} parent=47 // pred_check
        %p363 = pneg %p80
      $region54: #{lifting_scheme_forward.1} parent=47 // pred_check_branch
        %365 = sbr.rel (%p363) target = $region56
      $region55: #{lifting_scheme_forward.1} parent=47 // pred_region
        %p366 = scmp.lt.s32.totalorder %s25, 1
        %s367 = scalar_select %p366, %s25, 1
        %p368 = scmp.lt.s32.totalorder %s26, 0
        %s369 = scalar_select %p368, %s26, 0
        %s370 = sadd.s32 %s369, %s367
        %s371 = smul.addr %s370, 4
        %s372 = scalar_lea.vmem %s1, %s371
      $region56: #{lifting_scheme_forward.1} parent=47 // pred_fallthru
        _
    $region48: #{lifting_scheme_forward.1} parent=5 // pred_fallthru
      _
    %p373 = scmp.le.s32.totalorder 1, %s18
    %p374 = scmp.lt.s32.totalorder %s18, 3
    %p375 = pnand %p373, %p374
    %p376 = pneg %p375
    // Predicated region
    $region57: #{lifting_scheme_forward.1} parent=5 // pred_check
      _
    $region58: #{lifting_scheme_forward.1} parent=5 // pred_check_branch
      %378 = sbr.rel (%p375) target = $region60
    $region59: #{lifting_scheme_forward.1} parent=5 // pred_region
      %s379 = ssub.s32 %s18, 1
      %p380 = scmp.lt.s32.totalorder %s27, 1
      %s381 = scalar_select %p380, %s27, 1
      %p382 = scmp.lt.s32.totalorder %s28, 0
      %s383 = scalar_select %p382, %s28, 0
      %s384 = sadd.s32 %s383, %s381
      %s385 = smul.addr %s384, 4
      %s386 = scalar_lea.vmem %s0, %s385
      %p387 = pneg %p58
      %p388 = pneg %p55
      %p389 = scmp.lt.s32.totalorder %s27, 1
      %s390 = scalar_select %p389, %s27, 1
      %p391 = scmp.lt.s32.totalorder %s28, 0
      %s392 = scalar_select %p391, %s28, 0
      %s393 = sadd.s32 %s392, %s390
      %s394 = smul.addr %s393, 4
      %s395 = scalar_lea.vmem %s1, %s394
      %p396 = pneg %p86
      %p397 = pneg %p83
      %p398 = pneg %p107
      %p399 = pneg %p104
      %p400 = pneg %p128
      %p401 = pneg %p125
      %p402 = pneg %p149
      %p403 = pneg %p146
      %p404 = pneg %p170
      %p405 = pneg %p167
      %p406 = pneg %p191
      %p407 = pneg %p188
      %p408 = pneg %p212
      %p409 = pneg %p209
      %p410 = pneg %p233
      %p411 = pneg %p230
      %p412 = pneg %p254
      %p413 = pneg %p251
      %p414 = pneg %p282
      %p415 = pneg %p279
      %p416 = scmp.lt.s32.totalorder %s27, 1
      %s417 = scalar_select %p416, %s27, 1
      %p418 = scmp.lt.s32.totalorder %s28, 0
      %s419 = scalar_select %p418, %s28, 0
      %s420 = sadd.s32 %s419, %s417
      %s421 = smul.addr %s420, 4
      %s422 = scalar_lea.vmem %s10, %s421
      %p423 = pneg %p310
      %p424 = pneg %p307
      %p425 = scmp.lt.s32.totalorder %s27, 1
      %s426 = scalar_select %p425, %s27, 1
      %p427 = scmp.lt.s32.totalorder %s28, 0
      %s428 = scalar_select %p427, %s28, 0
      %s429 = sadd.s32 %s428, %s426
      %s430 = smul.addr %s429, 4
      %s431 = scalar_lea.vmem %s11, %s430
      %p432 = scmp.lt.s32.totalorder %s27, 1
      %s433 = scalar_select %p432, %s27, 1
      %p434 = scmp.lt.s32.totalorder %s28, 0
      %s435 = scalar_select %p434, %s28, 0
      %s436 = sadd.s32 %s435, %s433
      %s437 = smul.addr %s436, 4
      %s438 = scalar_lea.vmem %s0, %s437
      %p439 = scmp.lt.s32.totalorder %s27, 1
      %s440 = scalar_select %p439, %s27, 1
      %p441 = scmp.lt.s32.totalorder %s28, 0
      %s442 = scalar_select %p441, %s28, 0
      %s443 = sadd.s32 %s442, %s440
      %s444 = smul.addr %s443, 4
      %s445 = scalar_lea.vmem %s1, %s444
      %p446 = scmp.lt.s32.totalorder %s27, 1
      %s447 = scalar_select %p446, %s27, 1
      %p448 = scmp.lt.s32.totalorder %s28, 0
      %s449 = scalar_select %p448, %s28, 0
      %s450 = sadd.s32 %s449, %s447
      %s451 = smul.addr %s450, 4
      %s452 = scalar_lea.vmem %s10, %s451
      %p453 = scmp.lt.s32.totalorder %s27, 1
      %s454 = scalar_select %p453, %s27, 1
      %p455 = scmp.lt.s32.totalorder %s28, 0
      %s456 = scalar_select %p455, %s28, 0
      %s457 = sadd.s32 %s456, %s454
      %s458 = smul.addr %s457, 4
      %s459 = scalar_lea.vmem %s11, %s458
      %v460 = vld [vmem:[%s438] sm:$0xf]
      %v461 = vld [vmem:[%s445] sm:$0xf]
      %v462 = vlaneseq
      %v463 = vand.u32 %v462, 127
      %vm464 = vcmp.lt.s32.totalorder %v463, 0
      %v465 = vsub.s32 0, %v463
      %v466 = vsel %vm464, %v465, %v463
      %v467 = vshrl.u32 %v466, 3
      %v468 = vand.u32 %v466, 7
      %v469 = vsub.s32 0, %v468
      %v470 = vsel %vm464, %v469, %v468
      %vm471 = vcmp.ne.s32.totalorder %v470, 0
      %vm472 = vcmp.lt.s32.totalorder %v470, 0
      %vm473 = vmand %vm472, %vm471
      %v474 = vadd.s32 %v470, 8
      %v475 = vsel %vm473, %v474, %v470
      %vm476 = vcmp.eq.s32.totalorder %v475, 0
      %vm477 = vcmp.eq.s32.totalorder %v475, 1
      %vm478 = vcmp.eq.s32.totalorder %v475, 7
      %v479 = vld [vmem:[%s2] sm:$0xff]
      %v480 = vld [vmem:[%s2 + $0x8] sm:$0xff]
      %v481 = vld [vmem:[%s2 + $0x10] sm:$0xff]
      %v482 = vld [vmem:[%s2 + $0x18] sm:$0xff]
      %v483 = vld [vmem:[%s3] sm:$0xff]
      %v484 = vld [vmem:[%s4] sm:$0xf]
      %v485 = vld [vmem:[%s5] sm:$0xf]
      %v486 = vld [vmem:[%s6] sm:$0xff]
      %v487 = vld [vmem:[%s6 + $0x8] sm:$0xff]
      %v488 = vld [vmem:[%s6 + $0x10] sm:$0xff]
      %v489 = vld [vmem:[%s6 + $0x18] sm:$0xff]
      %v490 = vld [vmem:[%s7] sm:$0xff]
      %v491 = vld [vmem:[%s8] sm:$0xf]
      %v492 = vld [vmem:[%s9] sm:$0xf]
      %493 = vrot.lane.b32.xlu0 %v461, 2
      %v494 = vpop.permute.xlu0 %493
      %495 = vrot.lane.b32.xlu0 %v461, 126
      %v496 = vpop.permute.xlu0 %495
      %v497 = vsel %vm476, %v496, %v494
      %v498 = vsel %vm477, %v461, %v497
      %499 = vrot.lane.b32.xlu0 %v461, 1
      %v500 = vpop.permute.xlu0 %499
      %501 = vrot.lane.b32.xlu0 %v461, 127
      %v502 = vpop.permute.xlu0 %501
      %v503 = vsel %vm476, %v502, %v500
      %vm504 = vcmask 31744
      %v506 = vsel %vm504, %v480, 0
      %vm508 = vcmask 1043456
      %v510 = vsel %vm508, %v503, 0
      %512 = vmatprep.subr.mxu0 0.0
      %513 = vmatpush1.msra.mxu0 0.0
      %514 = vmatprep.subr.mxu0 0.0
      %515 = vmatpush1.msra.mxu0 0.0
      %516 = vmatprep.subr.mxu0 0.0
      %517 = vmatpush1.msra.mxu0 0.0
      %518 = vmatprep.subr.mxu0 0.0
      %519 = vmatpush1.msra.mxu0 0.0
      %520 = vmatprep.subr.mxu0 0.0
      %521 = vmatpush1.msra.mxu0 0.0
      %522 = vmatprep.subr.mxu0 0.0
      %523 = vmatpush1.msra.mxu0 0.0
      %524 = vmatprep.subr.mxu0 0.0
      %525 = vmatpush1.msra.mxu0 0.0
      %526 = vmatprep.subr.mxu0 0.0
      %527 = vmatpush1.msra.mxu0 0.0
      %528 = vmatprep.subr.mxu0 0.0
      %529 = vmatpush1.msra.mxu0 0.0
      %530 = vmatprep.subr.mxu0 0.0
      %531 = vmatpush1.msra.mxu0 0.0
      %532 = vmatprep.subr.mxu0 0.0
      %533 = vmatpush1.msra.mxu0 0.0
      %534 = vmatprep.subr.mxu0 0.0
      %535 = vmatpush1.msra.mxu0 0.0
      %536 = vmatprep.subr.mxu0 0.0
      %537 = vmatpush1.msra.mxu0 0.0
      %538 = vmatprep.subr.mxu0 0.0
      %539 = vmatpush1.msra.mxu0 0.0
      %540 = vmatprep.subr.mxu0 0.0
      %541 = vmatpush1.msra.mxu0 0.0
      %542 = vmatprep.subr.mxu0 0.0
      %543 = vmatpush1.msra.mxu0 %v510
      %544 = vmatprep.subr.mxu0 0.0
      %545 = vmatpush2.msra.mxu0 0.0
      %546 = vmatprep.subr.mxu0 0.0
      %547 = vmatpush2.msra.mxu0 0.0
      %548 = vmatprep.subr.mxu0 0.0
      %549 = vmatpush2.msra.mxu0 0.0
      %550 = vmatprep.subr.mxu0 0.0
      %551 = vmatpush2.msra.mxu0 0.0
      %552 = vmatprep.subr.mxu0 0.0
      %553 = vmatpush2.msra.mxu0 0.0
      %554 = vmatprep.subr.mxu0 0.0
      %555 = vmatpush2.msra.mxu0 0.0
      %556 = vmatprep.subr.mxu0 0.0
      %557 = vmatpush2.msra.mxu0 0.0
      %558 = vmatprep.subr.mxu0 0.0
      %559 = vmatpush2.msra.mxu0 0.0
      %560 = vmatprep.subr.mxu0 0.0
      %561 = vmatpush2.msra.mxu0 0.0
      %562 = vmatprep.subr.mxu0 0.0
      %563 = vmatpush2.msra.mxu0 0.0
      %564 = vmatprep.subr.mxu0 0.0
      %565 = vmatpush2.msra.mxu0 0.0
      %566 = vmatprep.subr.mxu0 0.0
      %567 = vmatpush2.msra.mxu0 0.0
      %568 = vmatprep.subr.mxu0 0.0
      %569 = vmatpush2.msra.mxu0 0.0
      %570 = vmatprep.subr.mxu0 0.0
      %571 = vmatpush2.msra.mxu0 0.0
      %572 = vmatprep.subr.mxu0 0.0
      %573 = vmatpush2.msra.mxu0 0.0
      %574 = vmatprep.subr.mxu0 0.0
      %575 = vmatpush2.msra.mxu0 0.0
      %576 = vmatprep.mubr.f32.mxu0 0.0
      %577 = vmatmul.mubr.f32.gmra.mxu0 %v506
      %v578 = vpop.f32.mrf.mxu0
      %v579 = vadd.f32 0.0, %v578
      %v580 = vpop.f32.mrf.mxu0
      %581 = vdwg.mxu0
      %v583 = vsel %vm504, %v479, 0
      %v586 = vsel %vm508, %v498, 0
      %588 = vmatprep.subr.mxu0 0.0
      %589 = vmatpush1.msra.mxu0 0.0
      %590 = vmatprep.subr.mxu0 0.0
      %591 = vmatpush1.msra.mxu0 0.0
      %592 = vmatprep.subr.mxu0 0.0
      %593 = vmatpush1.msra.mxu0 0.0
      %594 = vmatprep.subr.mxu0 0.0
      %595 = vmatpush1.msra.mxu0 0.0
      %596 = vmatprep.subr.mxu0 0.0
      %597 = vmatpush1.msra.mxu0 0.0
      %598 = vmatprep.subr.mxu0 0.0
      %599 = vmatpush1.msra.mxu0 0.0
      %600 = vmatprep.subr.mxu0 0.0
      %601 = vmatpush1.msra.mxu0 0.0
      %602 = vmatprep.subr.mxu0 0.0
      %603 = vmatpush1.msra.mxu0 0.0
      %604 = vmatprep.subr.mxu0 0.0
      %605 = vmatpush1.msra.mxu0 0.0
      %606 = vmatprep.subr.mxu0 0.0
      %607 = vmatpush1.msra.mxu0 0.0
      %608 = vmatprep.subr.mxu0 0.0
      %609 = vmatpush1.msra.mxu0 0.0
      %610 = vmatprep.subr.mxu0 0.0
      %611 = vmatpush1.msra.mxu0 0.0
      %612 = vmatprep.subr.mxu0 0.0
      %613 = vmatpush1.msra.mxu0 0.0
      %614 = vmatprep.subr.mxu0 0.0
      %615 = vmatpush1.msra.mxu0 0.0
      %616 = vmatprep.subr.mxu0 0.0
      %617 = vmatpush1.msra.mxu0 0.0
      %618 = vmatprep.subr.mxu0 0.0
      %619 = vmatpush1.msra.mxu0 %v586
      %620 = vmatprep.subr.mxu0 0.0
      %621 = vmatpush2.msra.mxu0 0.0
      %622 = vmatprep.subr.mxu0 0.0
      %623 = vmatpush2.msra.mxu0 0.0
      %624 = vmatprep.subr.mxu0 0.0
      %625 = vmatpush2.msra.mxu0 0.0
      %626 = vmatprep.subr.mxu0 0.0
      %627 = vmatpush2.msra.mxu0 0.0
      %628 = vmatprep.subr.mxu0 0.0
      %629 = vmatpush2.msra.mxu0 0.0
      %630 = vmatprep.subr.mxu0 0.0
      %631 = vmatpush2.msra.mxu0 0.0
      %632 = vmatprep.subr.mxu0 0.0
      %633 = vmatpush2.msra.mxu0 0.0
      %634 = vmatprep.subr.mxu0 0.0
      %635 = vmatpush2.msra.mxu0 0.0
      %636 = vmatprep.subr.mxu0 0.0
      %637 = vmatpush2.msra.mxu0 0.0
      %638 = vmatprep.subr.mxu0 0.0
      %639 = vmatpush2.msra.mxu0 0.0
      %640 = vmatprep.subr.mxu0 0.0
      %641 = vmatpush2.msra.mxu0 0.0
      %642 = vmatprep.subr.mxu0 0.0
      %643 = vmatpush2.msra.mxu0 0.0
      %644 = vmatprep.subr.mxu0 0.0
      %645 = vmatpush2.msra.mxu0 0.0
      %646 = vmatprep.subr.mxu0 0.0
      %647 = vmatpush2.msra.mxu0 0.0
      %648 = vmatprep.subr.mxu0 0.0
      %649 = vmatpush2.msra.mxu0 0.0
      %650 = vmatprep.subr.mxu0 0.0
      %651 = vmatpush2.msra.mxu0 0.0
      %652 = vmatprep.mubr.f32.mxu0 0.0
      %653 = vmatmul.mubr.f32.gmra.mxu0 %v583
      %v654 = vpop.f32.mrf.mxu0
      %v655 = vadd.f32 %v579, %v654
      %v656 = vpop.f32.mrf.mxu0
      %657 = vdwg.mxu0
      %v659 = vsel %vm504, %v481, 0
      %v662 = vsel %vm508, %v461, 0
      %664 = vmatprep.subr.mxu0 0.0
      %665 = vmatpush1.msra.mxu0 0.0
      %666 = vmatprep.subr.mxu0 0.0
      %667 = vmatpush1.msra.mxu0 0.0
      %668 = vmatprep.subr.mxu0 0.0
      %669 = vmatpush1.msra.mxu0 0.0
      %670 = vmatprep.subr.mxu0 0.0
      %671 = vmatpush1.msra.mxu0 0.0
      %672 = vmatprep.subr.mxu0 0.0
      %673 = vmatpush1.msra.mxu0 0.0
      %674 = vmatprep.subr.mxu0 0.0
      %675 = vmatpush1.msra.mxu0 0.0
      %676 = vmatprep.subr.mxu0 0.0
      %677 = vmatpush1.msra.mxu0 0.0
      %678 = vmatprep.subr.mxu0 0.0
      %679 = vmatpush1.msra.mxu0 0.0
      %680 = vmatprep.subr.mxu0 0.0
      %681 = vmatpush1.msra.mxu0 0.0
      %682 = vmatprep.subr.mxu0 0.0
      %683 = vmatpush1.msra.mxu0 0.0
      %684 = vmatprep.subr.mxu0 0.0
      %685 = vmatpush1.msra.mxu0 0.0
      %686 = vmatprep.subr.mxu0 0.0
      %687 = vmatpush1.msra.mxu0 0.0
      %688 = vmatprep.subr.mxu0 0.0
      %689 = vmatpush1.msra.mxu0 0.0
      %690 = vmatprep.subr.mxu0 0.0
      %691 = vmatpush1.msra.mxu0 0.0
      %692 = vmatprep.subr.mxu0 0.0
      %693 = vmatpush1.msra.mxu0 0.0
      %694 = vmatprep.subr.mxu0 0.0
      %695 = vmatpush1.msra.mxu0 %v662
      %696 = vmatprep.subr.mxu0 0.0
      %697 = vmatpush2.msra.mxu0 0.0
      %698 = vmatprep.subr.mxu0 0.0
      %699 = vmatpush2.msra.mxu0 0.0
      %700 = vmatprep.subr.mxu0 0.0
      %701 = vmatpush2.msra.mxu0 0.0
      %702 = vmatprep.subr.mxu0 0.0
      %703 = vmatpush2.msra.mxu0 0.0
      %704 = vmatprep.subr.mxu0 0.0
      %705 = vmatpush2.msra.mxu0 0.0
      %706 = vmatprep.subr.mxu0 0.0
      %707 = vmatpush2.msra.mxu0 0.0
      %708 = vmatprep.subr.mxu0 0.0
      %709 = vmatpush2.msra.mxu0 0.0
      %710 = vmatprep.subr.mxu0 0.0
      %711 = vmatpush2.msra.mxu0 0.0
      %712 = vmatprep.subr.mxu0 0.0
      %713 = vmatpush2.msra.mxu0 0.0
      %714 = vmatprep.subr.mxu0 0.0
      %715 = vmatpush2.msra.mxu0 0.0
      %716 = vmatprep.subr.mxu0 0.0
      %717 = vmatpush2.msra.mxu0 0.0
      %718 = vmatprep.subr.mxu0 0.0
      %719 = vmatpush2.msra.mxu0 0.0
      %720 = vmatprep.subr.mxu0 0.0
      %721 = vmatpush2.msra.mxu0 0.0
      %722 = vmatprep.subr.mxu0 0.0
      %723 = vmatpush2.msra.mxu0 0.0
      %724 = vmatprep.subr.mxu0 0.0
      %725 = vmatpush2.msra.mxu0 0.0
      %726 = vmatprep.subr.mxu0 0.0
      %727 = vmatpush2.msra.mxu0 0.0
      %728 = vmatprep.mubr.f32.mxu0 0.0
      %729 = vmatmul.mubr.f32.gmra.mxu0 %v659
      %v730 = vpop.f32.mrf.mxu0
      %v731 = vadd.f32 0.0, %v730
      %v732 = vpop.f32.mrf.mxu0
      %733 = vdwg.mxu0
      %v734 = vadd.f32 %v655, %v731
      %v735 = vsel %vm478, %v500, %v502
      %v737 = vsel %vm504, %v482, 0
      %v740 = vsel %vm508, %v735, 0
      %742 = vmatprep.subr.mxu0 0.0
      %743 = vmatpush1.msra.mxu0 0.0
      %744 = vmatprep.subr.mxu0 0.0
      %745 = vmatpush1.msra.mxu0 0.0
      %746 = vmatprep.subr.mxu0 0.0
      %747 = vmatpush1.msra.mxu0 0.0
      %748 = vmatprep.subr.mxu0 0.0
      %749 = vmatpush1.msra.mxu0 0.0
      %750 = vmatprep.subr.mxu0 0.0
      %751 = vmatpush1.msra.mxu0 0.0
      %752 = vmatprep.subr.mxu0 0.0
      %753 = vmatpush1.msra.mxu0 0.0
      %754 = vmatprep.subr.mxu0 0.0
      %755 = vmatpush1.msra.mxu0 0.0
      %756 = vmatprep.subr.mxu0 0.0
      %757 = vmatpush1.msra.mxu0 0.0
      %758 = vmatprep.subr.mxu0 0.0
      %759 = vmatpush1.msra.mxu0 0.0
      %760 = vmatprep.subr.mxu0 0.0
      %761 = vmatpush1.msra.mxu0 0.0
      %762 = vmatprep.subr.mxu0 0.0
      %763 = vmatpush1.msra.mxu0 0.0
      %764 = vmatprep.subr.mxu0 0.0
      %765 = vmatpush1.msra.mxu0 0.0
      %766 = vmatprep.subr.mxu0 0.0
      %767 = vmatpush1.msra.mxu0 0.0
      %768 = vmatprep.subr.mxu0 0.0
      %769 = vmatpush1.msra.mxu0 0.0
      %770 = vmatprep.subr.mxu0 0.0
      %771 = vmatpush1.msra.mxu0 0.0
      %772 = vmatprep.subr.mxu0 0.0
      %773 = vmatpush1.msra.mxu0 %v740
      %774 = vmatprep.subr.mxu0 0.0
      %775 = vmatpush2.msra.mxu0 0.0
      %776 = vmatprep.subr.mxu0 0.0
      %777 = vmatpush2.msra.mxu0 0.0
      %778 = vmatprep.subr.mxu0 0.0
      %779 = vmatpush2.msra.mxu0 0.0
      %780 = vmatprep.subr.mxu0 0.0
      %781 = vmatpush2.msra.mxu0 0.0
      %782 = vmatprep.subr.mxu0 0.0
      %783 = vmatpush2.msra.mxu0 0.0
      %784 = vmatprep.subr.mxu0 0.0
      %785 = vmatpush2.msra.mxu0 0.0
      %786 = vmatprep.subr.mxu0 0.0
      %787 = vmatpush2.msra.mxu0 0.0
      %788 = vmatprep.subr.mxu0 0.0
      %789 = vmatpush2.msra.mxu0 0.0
      %790 = vmatprep.subr.mxu0 0.0
      %791 = vmatpush2.msra.mxu0 0.0
      %792 = vmatprep.subr.mxu0 0.0
      %793 = vmatpush2.msra.mxu0 0.0
      %794 = vmatprep.subr.mxu0 0.0
      %795 = vmatpush2.msra.mxu0 0.0
      %796 = vmatprep.subr.mxu0 0.0
      %797 = vmatpush2.msra.mxu0 0.0
      %798 = vmatprep.subr.mxu0 0.0
      %799 = vmatpush2.msra.mxu0 0.0
      %800 = vmatprep.subr.mxu0 0.0
      %801 = vmatpush2.msra.mxu0 0.0
      %802 = vmatprep.subr.mxu0 0.0
      %803 = vmatpush2.msra.mxu0 0.0
      %804 = vmatprep.subr.mxu0 0.0
      %805 = vmatpush2.msra.mxu0 0.0
      %806 = vmatprep.mubr.f32.mxu0 0.0
      %807 = vmatmul.mubr.f32.gmra.mxu0 %v737
      %v808 = vpop.f32.mrf.mxu0
      %v809 = vadd.f32 0.0, %v808
      %v810 = vpop.f32.mrf.mxu0
      %811 = vdwg.mxu0
      %v812 = vadd.f32 %v734, %v809
      %814 = vset.pattern.permute.xlu0 0
      %815 = vperm.xlu0 %814, %v483
      %v816 = vpop.permute.xlu0 %815
      %v818 = vadd.f32 %v812, %v816
      %v819 = vmax.f32 %v818, 0.0
      %821 = vset.pattern.permute.xlu0 0
      %822 = vperm.xlu0 %821, %v485
      %v823 = vpop.permute.xlu0 %822
      %vm825 = vcmask 64512
      %v827 = vsel %vm825, %v484, 0
      %829 = vmatprep.subr.mxu0 0.0
      %830 = vmatpush1.msra.mxu0 0.0
      %831 = vmatprep.subr.mxu0 0.0
      %832 = vmatpush1.msra.mxu0 0.0
      %833 = vmatprep.subr.mxu0 0.0
      %834 = vmatpush1.msra.mxu0 0.0
      %835 = vmatprep.subr.mxu0 0.0
      %836 = vmatpush1.msra.mxu0 0.0
      %837 = vmatprep.subr.mxu0 0.0
      %838 = vmatpush1.msra.mxu0 0.0
      %839 = vmatprep.subr.mxu0 0.0
      %840 = vmatpush1.msra.mxu0 0.0
      %841 = vmatprep.subr.mxu0 0.0
      %842 = vmatpush1.msra.mxu0 0.0
      %843 = vmatprep.subr.mxu0 0.0
      %844 = vmatpush1.msra.mxu0 0.0
      %845 = vmatprep.subr.mxu0 0.0
      %846 = vmatpush1.msra.mxu0 0.0
      %847 = vmatprep.subr.mxu0 0.0
      %848 = vmatpush1.msra.mxu0 0.0
      %849 = vmatprep.subr.mxu0 0.0
      %850 = vmatpush1.msra.mxu0 0.0
      %851 = vmatprep.subr.mxu0 0.0
      %852 = vmatpush1.msra.mxu0 0.0
      %853 = vmatprep.subr.mxu0 0.0
      %854 = vmatpush1.msra.mxu0 0.0
      %855 = vmatprep.subr.mxu0 0.0
      %856 = vmatpush1.msra.mxu0 0.0
      %857 = vmatprep.subr.mxu0 0.0
      %858 = vmatpush1.msra.mxu0 0.0
      %859 = vmatprep.subr.mxu0 0.0
      %860 = vmatpush1.msra.mxu0 %v819
      %861 = vmatprep.subr.mxu0 0.0
      %862 = vmatpush2.msra.mxu0 0.0
      %863 = vmatprep.subr.mxu0 0.0
      %864 = vmatpush2.msra.mxu0 0.0
      %865 = vmatprep.subr.mxu0 0.0
      %866 = vmatpush2.msra.mxu0 0.0
      %867 = vmatprep.subr.mxu0 0.0
      %868 = vmatpush2.msra.mxu0 0.0
      %869 = vmatprep.subr.mxu0 0.0
      %870 = vmatpush2.msra.mxu0 0.0
      %871 = vmatprep.subr.mxu0 0.0
      %872 = vmatpush2.msra.mxu0 0.0
      %873 = vmatprep.subr.mxu0 0.0
      %874 = vmatpush2.msra.mxu0 0.0
      %875 = vmatprep.subr.mxu0 0.0
      %876 = vmatpush2.msra.mxu0 0.0
      %877 = vmatprep.subr.mxu0 0.0
      %878 = vmatpush2.msra.mxu0 0.0
      %879 = vmatprep.subr.mxu0 0.0
      %880 = vmatpush2.msra.mxu0 0.0
      %881 = vmatprep.subr.mxu0 0.0
      %882 = vmatpush2.msra.mxu0 0.0
      %883 = vmatprep.subr.mxu0 0.0
      %884 = vmatpush2.msra.mxu0 0.0
      %885 = vmatprep.subr.mxu0 0.0
      %886 = vmatpush2.msra.mxu0 0.0
      %887 = vmatprep.subr.mxu0 0.0
      %888 = vmatpush2.msra.mxu0 0.0
      %889 = vmatprep.subr.mxu0 0.0
      %890 = vmatpush2.msra.mxu0 0.0
      %891 = vmatprep.subr.mxu0 0.0
      %892 = vmatpush2.msra.mxu0 0.0
      %893 = vmatprep.mubr.f32.mxu0 0.0
      %894 = vmatmul.mubr.f32.gmra.mxu0 %v827
      %v895 = vpop.f32.mrf.mxu0
      %v896 = vadd.f32 %v823, %v895
      %v897 = vpop.f32.mrf.mxu0
      %898 = vdwg.mxu0
      %v899 = vtanh.pop %v896
      %v900 = vadd.f32 %v460, %v899
      %901 = vrot.lane.b32.xlu0 %v900, 2
      %v902 = vpop.permute.xlu0 %901
      %903 = vrot.lane.b32.xlu0 %v900, 126
      %v904 = vpop.permute.xlu0 %903
      %v905 = vsel %vm476, %v904, %v902
      %v906 = vsel %vm477, %v900, %v905
      %907 = vrot.lane.b32.xlu0 %v900, 1
      %v908 = vpop.permute.xlu0 %907
      %909 = vrot.lane.b32.xlu0 %v900, 127
      %v910 = vpop.permute.xlu0 %909
      %v911 = vsel %vm476, %v910, %v908
      %v913 = vsel %vm504, %v487, 0
      %v916 = vsel %vm508, %v911, 0
      %918 = vmatprep.subr.mxu0 0.0
      %919 = vmatpush1.msra.mxu0 0.0
      %920 = vmatprep.subr.mxu0 0.0
      %921 = vmatpush1.msra.mxu0 0.0
      %922 = vmatprep.subr.mxu0 0.0
      %923 = vmatpush1.msra.mxu0 0.0
      %924 = vmatprep.subr.mxu0 0.0
      %925 = vmatpush1.msra.mxu0 0.0
      %926 = vmatprep.subr.mxu0 0.0
      %927 = vmatpush1.msra.mxu0 0.0
      %928 = vmatprep.subr.mxu0 0.0
      %929 = vmatpush1.msra.mxu0 0.0
      %930 = vmatprep.subr.mxu0 0.0
      %931 = vmatpush1.msra.mxu0 0.0
      %932 = vmatprep.subr.mxu0 0.0
      %933 = vmatpush1.msra.mxu0 0.0
      %934 = vmatprep.subr.mxu0 0.0
      %935 = vmatpush1.msra.mxu0 0.0
      %936 = vmatprep.subr.mxu0 0.0
      %937 = vmatpush1.msra.mxu0 0.0
      %938 = vmatprep.subr.mxu0 0.0
      %939 = vmatpush1.msra.mxu0 0.0
      %940 = vmatprep.subr.mxu0 0.0
      %941 = vmatpush1.msra.mxu0 0.0
      %942 = vmatprep.subr.mxu0 0.0
      %943 = vmatpush1.msra.mxu0 0.0
      %944 = vmatprep.subr.mxu0 0.0
      %945 = vmatpush1.msra.mxu0 0.0
      %946 = vmatprep.subr.mxu0 0.0
      %947 = vmatpush1.msra.mxu0 0.0
      %948 = vmatprep.subr.mxu0 0.0
      %949 = vmatpush1.msra.mxu0 %v916
      %950 = vmatprep.subr.mxu0 0.0
      %951 = vmatpush2.msra.mxu0 0.0
      %952 = vmatprep.subr.mxu0 0.0
      %953 = vmatpush2.msra.mxu0 0.0
      %954 = vmatprep.subr.mxu0 0.0
      %955 = vmatpush2.msra.mxu0 0.0
      %956 = vmatprep.subr.mxu0 0.0
      %957 = vmatpush2.msra.mxu0 0.0
      %958 = vmatprep.subr.mxu0 0.0
      %959 = vmatpush2.msra.mxu0 0.0
      %960 = vmatprep.subr.mxu0 0.0
      %961 = vmatpush2.msra.mxu0 0.0
      %962 = vmatprep.subr.mxu0 0.0
      %963 = vmatpush2.msra.mxu0 0.0
      %964 = vmatprep.subr.mxu0 0.0
      %965 = vmatpush2.msra.mxu0 0.0
      %966 = vmatprep.subr.mxu0 0.0
      %967 = vmatpush2.msra.mxu0 0.0
      %968 = vmatprep.subr.mxu0 0.0
      %969 = vmatpush2.msra.mxu0 0.0
      %970 = vmatprep.subr.mxu0 0.0
      %971 = vmatpush2.msra.mxu0 0.0
      %972 = vmatprep.subr.mxu0 0.0
      %973 = vmatpush2.msra.mxu0 0.0
      %974 = vmatprep.subr.mxu0 0.0
      %975 = vmatpush2.msra.mxu0 0.0
      %976 = vmatprep.subr.mxu0 0.0
      %977 = vmatpush2.msra.mxu0 0.0
      %978 = vmatprep.subr.mxu0 0.0
      %979 = vmatpush2.msra.mxu0 0.0
      %980 = vmatprep.subr.mxu0 0.0
      %981 = vmatpush2.msra.mxu0 0.0
      %982 = vmatprep.mubr.f32.mxu0 0.0
      %983 = vmatmul.mubr.f32.gmra.mxu0 %v913
      %v984 = vpop.f32.mrf.mxu0
      %v985 = vadd.f32 0.0, %v984
      %v986 = vpop.f32.mrf.mxu0
      %987 = vdwg.mxu0
      %v989 = vsel %vm504, %v486, 0
      %v992 = vsel %vm508, %v906, 0
      %994 = vmatprep.subr.mxu0 0.0
      %995 = vmatpush1.msra.mxu0 0.0
      %996 = vmatprep.subr.mxu0 0.0
      %997 = vmatpush1.msra.mxu0 0.0
      %998 = vmatprep.subr.mxu0 0.0
      %999 = vmatpush1.msra.mxu0 0.0
      %1000 = vmatprep.subr.mxu0 0.0
      %1001 = vmatpush1.msra.mxu0 0.0
      %1002 = vmatprep.subr.mxu0 0.0
      %1003 = vmatpush1.msra.mxu0 0.0
      %1004 = vmatprep.subr.mxu0 0.0
      %1005 = vmatpush1.msra.mxu0 0.0
      %1006 = vmatprep.subr.mxu0 0.0
      %1007 = vmatpush1.msra.mxu0 0.0
      %1008 = vmatprep.subr.mxu0 0.0
      %1009 = vmatpush1.msra.mxu0 0.0
      %1010 = vmatprep.subr.mxu0 0.0
      %1011 = vmatpush1.msra.mxu0 0.0
      %1012 = vmatprep.subr.mxu0 0.0
      %1013 = vmatpush1.msra.mxu0 0.0
      %1014 = vmatprep.subr.mxu0 0.0
      %1015 = vmatpush1.msra.mxu0 0.0
      %1016 = vmatprep.subr.mxu0 0.0
      %1017 = vmatpush1.msra.mxu0 0.0
      %1018 = vmatprep.subr.mxu0 0.0
      %1019 = vmatpush1.msra.mxu0 0.0
      %1020 = vmatprep.subr.mxu0 0.0
      %1021 = vmatpush1.msra.mxu0 0.0
      %1022 = vmatprep.subr.mxu0 0.0
      %1023 = vmatpush1.msra.mxu0 0.0
      %1024 = vmatprep.subr.mxu0 0.0
      %1025 = vmatpush1.msra.mxu0 %v992
      %1026 = vmatprep.subr.mxu0 0.0
      %1027 = vmatpush2.msra.mxu0 0.0
      %1028 = vmatprep.subr.mxu0 0.0
      %1029 = vmatpush2.msra.mxu0 0.0
      %1030 = vmatprep.subr.mxu0 0.0
      %1031 = vmatpush2.msra.mxu0 0.0
      %1032 = vmatprep.subr.mxu0 0.0
      %1033 = vmatpush2.msra.mxu0 0.0
      %1034 = vmatprep.subr.mxu0 0.0
      %1035 = vmatpush2.msra.mxu0 0.0
      %1036 = vmatprep.subr.mxu0 0.0
      %1037 = vmatpush2.msra.mxu0 0.0
      %1038 = vmatprep.subr.mxu0 0.0
      %1039 = vmatpush2.msra.mxu0 0.0
      %1040 = vmatprep.subr.mxu0 0.0
      %1041 = vmatpush2.msra.mxu0 0.0
      %1042 = vmatprep.subr.mxu0 0.0
      %1043 = vmatpush2.msra.mxu0 0.0
      %1044 = vmatprep.subr.mxu0 0.0
      %1045 = vmatpush2.msra.mxu0 0.0
      %1046 = vmatprep.subr.mxu0 0.0
      %1047 = vmatpush2.msra.mxu0 0.0
      %1048 = vmatprep.subr.mxu0 0.0
      %1049 = vmatpush2.msra.mxu0 0.0
      %1050 = vmatprep.subr.mxu0 0.0
      %1051 = vmatpush2.msra.mxu0 0.0
      %1052 = vmatprep.subr.mxu0 0.0
      %1053 = vmatpush2.msra.mxu0 0.0
      %1054 = vmatprep.subr.mxu0 0.0
      %1055 = vmatpush2.msra.mxu0 0.0
      %1056 = vmatprep.subr.mxu0 0.0
      %1057 = vmatpush2.msra.mxu0 0.0
      %1058 = vmatprep.mubr.f32.mxu0 0.0
      %1059 = vmatmul.mubr.f32.gmra.mxu0 %v989
      %v1060 = vpop.f32.mrf.mxu0
      %v1061 = vadd.f32 %v985, %v1060
      %v1062 = vpop.f32.mrf.mxu0
      %1063 = vdwg.mxu0
      %v1065 = vsel %vm504, %v488, 0
      %v1068 = vsel %vm508, %v900, 0
      %1070 = vmatprep.subr.mxu0 0.0
      %1071 = vmatpush1.msra.mxu0 0.0
      %1072 = vmatprep.subr.mxu0 0.0
      %1073 = vmatpush1.msra.mxu0 0.0
      %1074 = vmatprep.subr.mxu0 0.0
      %1075 = vmatpush1.msra.mxu0 0.0
      %1076 = vmatprep.subr.mxu0 0.0
      %1077 = vmatpush1.msra.mxu0 0.0
      %1078 = vmatprep.subr.mxu0 0.0
      %1079 = vmatpush1.msra.mxu0 0.0
      %1080 = vmatprep.subr.mxu0 0.0
      %1081 = vmatpush1.msra.mxu0 0.0
      %1082 = vmatprep.subr.mxu0 0.0
      %1083 = vmatpush1.msra.mxu0 0.0
      %1084 = vmatprep.subr.mxu0 0.0
      %1085 = vmatpush1.msra.mxu0 0.0
      %1086 = vmatprep.subr.mxu0 0.0
      %1087 = vmatpush1.msra.mxu0 0.0
      %1088 = vmatprep.subr.mxu0 0.0
      %1089 = vmatpush1.msra.mxu0 0.0
      %1090 = vmatprep.subr.mxu0 0.0
      %1091 = vmatpush1.msra.mxu0 0.0
      %1092 = vmatprep.subr.mxu0 0.0
      %1093 = vmatpush1.msra.mxu0 0.0
      %1094 = vmatprep.subr.mxu0 0.0
      %1095 = vmatpush1.msra.mxu0 0.0
      %1096 = vmatprep.subr.mxu0 0.0
      %1097 = vmatpush1.msra.mxu0 0.0
      %1098 = vmatprep.subr.mxu0 0.0
      %1099 = vmatpush1.msra.mxu0 0.0
      %1100 = vmatprep.subr.mxu0 0.0
      %1101 = vmatpush1.msra.mxu0 %v1068
      %1102 = vmatprep.subr.mxu0 0.0
      %1103 = vmatpush2.msra.mxu0 0.0
      %1104 = vmatprep.subr.mxu0 0.0
      %1105 = vmatpush2.msra.mxu0 0.0
      %1106 = vmatprep.subr.mxu0 0.0
      %1107 = vmatpush2.msra.mxu0 0.0
      %1108 = vmatprep.subr.mxu0 0.0
      %1109 = vmatpush2.msra.mxu0 0.0
      %1110 = vmatprep.subr.mxu0 0.0
      %1111 = vmatpush2.msra.mxu0 0.0
      %1112 = vmatprep.subr.mxu0 0.0
      %1113 = vmatpush2.msra.mxu0 0.0
      %1114 = vmatprep.subr.mxu0 0.0
      %1115 = vmatpush2.msra.mxu0 0.0
      %1116 = vmatprep.subr.mxu0 0.0
      %1117 = vmatpush2.msra.mxu0 0.0
      %1118 = vmatprep.subr.mxu0 0.0
      %1119 = vmatpush2.msra.mxu0 0.0
      %1120 = vmatprep.subr.mxu0 0.0
      %1121 = vmatpush2.msra.mxu0 0.0
      %1122 = vmatprep.subr.mxu0 0.0
      %1123 = vmatpush2.msra.mxu0 0.0
      %1124 = vmatprep.subr.mxu0 0.0
      %1125 = vmatpush2.msra.mxu0 0.0
      %1126 = vmatprep.subr.mxu0 0.0
      %1127 = vmatpush2.msra.mxu0 0.0
      %1128 = vmatprep.subr.mxu0 0.0
      %1129 = vmatpush2.msra.mxu0 0.0
      %1130 = vmatprep.subr.mxu0 0.0
      %1131 = vmatpush2.msra.mxu0 0.0
      %1132 = vmatprep.subr.mxu0 0.0
      %1133 = vmatpush2.msra.mxu0 0.0
      %1134 = vmatprep.mubr.f32.mxu0 0.0
      %1135 = vmatmul.mubr.f32.gmra.mxu0 %v1065
      %v1136 = vpop.f32.mrf.mxu0
      %v1137 = vadd.f32 0.0, %v1136
      %v1138 = vpop.f32.mrf.mxu0
      %1139 = vdwg.mxu0
      %v1140 = vadd.f32 %v1061, %v1137
      %v1141 = vsel %vm478, %v908, %v910
      %v1143 = vsel %vm504, %v489, 0
      %v1146 = vsel %vm508, %v1141, 0
      %1148 = vmatprep.subr.mxu0 0.0
      %1149 = vmatpush1.msra.mxu0 0.0
      %1150 = vmatprep.subr.mxu0 0.0
      %1151 = vmatpush1.msra.mxu0 0.0
      %1152 = vmatprep.subr.mxu0 0.0
      %1153 = vmatpush1.msra.mxu0 0.0
      %1154 = vmatprep.subr.mxu0 0.0
      %1155 = vmatpush1.msra.mxu0 0.0
      %1156 = vmatprep.subr.mxu0 0.0
      %1157 = vmatpush1.msra.mxu0 0.0
      %1158 = vmatprep.subr.mxu0 0.0
      %1159 = vmatpush1.msra.mxu0 0.0
      %1160 = vmatprep.subr.mxu0 0.0
      %1161 = vmatpush1.msra.mxu0 0.0
      %1162 = vmatprep.subr.mxu0 0.0
      %1163 = vmatpush1.msra.mxu0 0.0
      %1164 = vmatprep.subr.mxu0 0.0
      %1165 = vmatpush1.msra.mxu0 0.0
      %1166 = vmatprep.subr.mxu0 0.0
      %1167 = vmatpush1.msra.mxu0 0.0
      %1168 = vmatprep.subr.mxu0 0.0
      %1169 = vmatpush1.msra.mxu0 0.0
      %1170 = vmatprep.subr.mxu0 0.0
      %1171 = vmatpush1.msra.mxu0 0.0
      %1172 = vmatprep.subr.mxu0 0.0
      %1173 = vmatpush1.msra.mxu0 0.0
      %1174 = vmatprep.subr.mxu0 0.0
      %1175 = vmatpush1.msra.mxu0 0.0
      %1176 = vmatprep.subr.mxu0 0.0
      %1177 = vmatpush1.msra.mxu0 0.0
      %1178 = vmatprep.subr.mxu0 0.0
      %1179 = vmatpush1.msra.mxu0 %v1146
      %1180 = vmatprep.subr.mxu0 0.0
      %1181 = vmatpush2.msra.mxu0 0.0
      %1182 = vmatprep.subr.mxu0 0.0
      %1183 = vmatpush2.msra.mxu0 0.0
      %1184 = vmatprep.subr.mxu0 0.0
      %1185 = vmatpush2.msra.mxu0 0.0
      %1186 = vmatprep.subr.mxu0 0.0
      %1187 = vmatpush2.msra.mxu0 0.0
      %1188 = vmatprep.subr.mxu0 0.0
      %1189 = vmatpush2.msra.mxu0 0.0
      %1190 = vmatprep.subr.mxu0 0.0
      %1191 = vmatpush2.msra.mxu0 0.0
      %1192 = vmatprep.subr.mxu0 0.0
      %1193 = vmatpush2.msra.mxu0 0.0
      %1194 = vmatprep.subr.mxu0 0.0
      %1195 = vmatpush2.msra.mxu0 0.0
      %1196 = vmatprep.subr.mxu0 0.0
      %1197 = vmatpush2.msra.mxu0 0.0
      %1198 = vmatprep.subr.mxu0 0.0
      %1199 = vmatpush2.msra.mxu0 0.0
      %1200 = vmatprep.subr.mxu0 0.0
      %1201 = vmatpush2.msra.mxu0 0.0
      %1202 = vmatprep.subr.mxu0 0.0
      %1203 = vmatpush2.msra.mxu0 0.0
      %1204 = vmatprep.subr.mxu0 0.0
      %1205 = vmatpush2.msra.mxu0 0.0
      %1206 = vmatprep.subr.mxu0 0.0
      %1207 = vmatpush2.msra.mxu0 0.0
      %1208 = vmatprep.subr.mxu0 0.0
      %1209 = vmatpush2.msra.mxu0 0.0
      %1210 = vmatprep.subr.mxu0 0.0
      %1211 = vmatpush2.msra.mxu0 0.0
      %1212 = vmatprep.mubr.f32.mxu0 0.0
      %1213 = vmatmul.mubr.f32.gmra.mxu0 %v1143
      %v1214 = vpop.f32.mrf.mxu0
      %v1215 = vadd.f32 0.0, %v1214
      %v1216 = vpop.f32.mrf.mxu0
      %1217 = vdwg.mxu0
      %v1218 = vadd.f32 %v1140, %v1215
      %1220 = vset.pattern.permute.xlu0 0
      %1221 = vperm.xlu0 %1220, %v490
      %v1222 = vpop.permute.xlu0 %1221
      %v1224 = vadd.f32 %v1218, %v1222
      %v1225 = vmax.f32 %v1224, 0.0
      %1227 = vset.pattern.permute.xlu0 0
      %1228 = vperm.xlu0 %1227, %v492
      %v1229 = vpop.permute.xlu0 %1228
      %v1232 = vsel %vm825, %v491, 0
      %1234 = vmatprep.subr.mxu0 0.0
      %1235 = vmatpush1.msra.mxu0 0.0
      %1236 = vmatprep.subr.mxu0 0.0
      %1237 = vmatpush1.msra.mxu0 0.0
      %1238 = vmatprep.subr.mxu0 0.0
      %1239 = vmatpush1.msra.mxu0 0.0
      %1240 = vmatprep.subr.mxu0 0.0
      %1241 = vmatpush1.msra.mxu0 0.0
      %1242 = vmatprep.subr.mxu0 0.0
      %1243 = vmatpush1.msra.mxu0 0.0
      %1244 = vmatprep.subr.mxu0 0.0
      %1245 = vmatpush1.msra.mxu0 0.0
      %1246 = vmatprep.subr.mxu0 0.0
      %1247 = vmatpush1.msra.mxu0 0.0
      %1248 = vmatprep.subr.mxu0 0.0
      %1249 = vmatpush1.msra.mxu0 0.0
      %1250 = vmatprep.subr.mxu0 0.0
      %1251 = vmatpush1.msra.mxu0 0.0
      %1252 = vmatprep.subr.mxu0 0.0
      %1253 = vmatpush1.msra.mxu0 0.0
      %1254 = vmatprep.subr.mxu0 0.0
      %1255 = vmatpush1.msra.mxu0 0.0
      %1256 = vmatprep.subr.mxu0 0.0
      %1257 = vmatpush1.msra.mxu0 0.0
      %1258 = vmatprep.subr.mxu0 0.0
      %1259 = vmatpush1.msra.mxu0 0.0
      %1260 = vmatprep.subr.mxu0 0.0
      %1261 = vmatpush1.msra.mxu0 0.0
      %1262 = vmatprep.subr.mxu0 0.0
      %1263 = vmatpush1.msra.mxu0 0.0
      %1264 = vmatprep.subr.mxu0 0.0
      %1265 = vmatpush1.msra.mxu0 %v1225
      %1266 = vmatprep.subr.mxu0 0.0
      %1267 = vmatpush2.msra.mxu0 0.0
      %1268 = vmatprep.subr.mxu0 0.0
      %1269 = vmatpush2.msra.mxu0 0.0
      %1270 = vmatprep.subr.mxu0 0.0
      %1271 = vmatpush2.msra.mxu0 0.0
      %1272 = vmatprep.subr.mxu0 0.0
      %1273 = vmatpush2.msra.mxu0 0.0
      %1274 = vmatprep.subr.mxu0 0.0
      %1275 = vmatpush2.msra.mxu0 0.0
      %1276 = vmatprep.subr.mxu0 0.0
      %1277 = vmatpush2.msra.mxu0 0.0
      %1278 = vmatprep.subr.mxu0 0.0
      %1279 = vmatpush2.msra.mxu0 0.0
      %1280 = vmatprep.subr.mxu0 0.0
      %1281 = vmatpush2.msra.mxu0 0.0
      %1282 = vmatprep.subr.mxu0 0.0
      %1283 = vmatpush2.msra.mxu0 0.0
      %1284 = vmatprep.subr.mxu0 0.0
      %1285 = vmatpush2.msra.mxu0 0.0
      %1286 = vmatprep.subr.mxu0 0.0
      %1287 = vmatpush2.msra.mxu0 0.0
      %1288 = vmatprep.subr.mxu0 0.0
      %1289 = vmatpush2.msra.mxu0 0.0
      %1290 = vmatprep.subr.mxu0 0.0
      %1291 = vmatpush2.msra.mxu0 0.0
      %1292 = vmatprep.subr.mxu0 0.0
      %1293 = vmatpush2.msra.mxu0 0.0
      %1294 = vmatprep.subr.mxu0 0.0
      %1295 = vmatpush2.msra.mxu0 0.0
      %1296 = vmatprep.subr.mxu0 0.0
      %1297 = vmatpush2.msra.mxu0 0.0
      %1298 = vmatprep.mubr.f32.mxu0 0.0
      %1299 = vmatmul.mubr.f32.gmra.mxu0 %v1232
      %v1300 = vpop.f32.mrf.mxu0
      %v1301 = vadd.f32 %v1229, %v1300
      %v1302 = vpop.f32.mrf.mxu0
      %1303 = vdwg.mxu0
      %v1304 = vtanh.pop %v1301
      %v1305 = vsub.f32 %v461, %v1304
      %1306 = vst [vmem:[%s452] sm:$0xf] %v900
      %1307 = vst [vmem:[%s459] sm:$0xf] %v1305
      %p1308 = scmp.lt.s32.totalorder %s27, 1
      %s1309 = scalar_select %p1308, %s27, 1
      %p1310 = scmp.lt.s32.totalorder %s28, 0
      %s1311 = scalar_select %p1310, %s28, 0
      %s1312 = sadd.s32 %s1311, %s1309
      %s1313 = smul.addr %s1312, 4
      %s1314 = scalar_lea.vmem %s10, %s1313
      %p1315 = scmp.lt.s32.totalorder %s27, 1
      %s1316 = scalar_select %p1315, %s27, 1
      %p1317 = scmp.lt.s32.totalorder %s28, 0
      %s1318 = scalar_select %p1317, %s28, 0
      %s1319 = sadd.s32 %s1318, %s1316
      %s1320 = smul.addr %s1319, 4
      %s1321 = scalar_lea.vmem %s11, %s1320
      // Predicated region
      $region61: #{lifting_scheme_forward.1} parent=59 // pred_check
        %p1322 = pneg %p279
      $region62: #{lifting_scheme_forward.1} parent=59 // pred_check_branch
        %1324 = sbr.rel (%p1322) target = $region64
      $region63: #{lifting_scheme_forward.1} parent=59 // pred_region
        _
      $region64: #{lifting_scheme_forward.1} parent=59 // pred_fallthru
        _
      // Predicated region
      $region65: #{lifting_scheme_forward.1} parent=59 // pred_check
        %p1325 = pneg %p307
      $region66: #{lifting_scheme_forward.1} parent=59 // pred_check_branch
        %1327 = sbr.rel (%p1325) target = $region68
      $region67: #{lifting_scheme_forward.1} parent=59 // pred_region
        _
      $region68: #{lifting_scheme_forward.1} parent=59 // pred_fallthru
        _
    $region60: #{lifting_scheme_forward.1} parent=5 // pred_fallthru
      _
    %p1328 = scmp.le.s32.totalorder 2, %s18
    // Predicated region
    $region69: #{lifting_scheme_forward.1} parent=5 // pred_check
      %p1329 = pneg %p1328
    $region70: #{lifting_scheme_forward.1} parent=5 // pred_check_branch
      %1331 = sbr.rel (%p1329) target = $region72
    $region71: #{lifting_scheme_forward.1} parent=5 // pred_region
      %s1332 = ssub.s32 %s18, 2
      // Predicated region
      $region73: #{lifting_scheme_forward.1} parent=71 // pred_check
        %p1333 = pneg %p285
      $region74: #{lifting_scheme_forward.1} parent=71 // pred_check_branch
        %1335 = sbr.rel (%p1333) target = $region76
      $region75: #{lifting_scheme_forward.1} parent=71 // pred_region
        %p1336 = scmp.lt.s32.totalorder %s29, 1
        %s1337 = scalar_select %p1336, %s29, 1
        %p1338 = scmp.lt.s32.totalorder %s30, 0
        %s1339 = scalar_select %p1338, %s30, 0
        %s1340 = sadd.s32 %s1339, %s1337
        %s1341 = smul.addr %s1340, 4
        %s1342 = scalar_lea.vmem %s10, %s1341
      $region76: #{lifting_scheme_forward.1} parent=71 // pred_fallthru
        _
      // Predicated region
      $region77: #{lifting_scheme_forward.1} parent=71 // pred_check
        %p1343 = pneg %p313
      $region78: #{lifting_scheme_forward.1} parent=71 // pred_check_branch
        %1345 = sbr.rel (%p1343) target = $region80
      $region79: #{lifting_scheme_forward.1} parent=71 // pred_region
        %p1346 = scmp.lt.s32.totalorder %s29, 1
        %s1347 = scalar_select %p1346, %s29, 1
        %p1348 = scmp.lt.s32.totalorder %s30, 0
        %s1349 = scalar_select %p1348, %s30, 0
        %s1350 = sadd.s32 %s1349, %s1347
        %s1351 = smul.addr %s1350, 4
        %s1352 = scalar_lea.vmem %s11, %s1351
      $region80: #{lifting_scheme_forward.1} parent=71 // pred_fallthru
        _
    $region72: #{lifting_scheme_forward.1} parent=5 // pred_fallthru
      _
  $region6: #{lifting_scheme_forward.1} parent=0 // loop_footer
    %s22 = sadd.s32 1, %s18
  $region7: #{lifting_scheme_forward.1} parent=0 // loop_footer_branch
    %17 = sbr.rel target = $region3
  $region8: #{lifting_scheme_forward.1} parent=0 // loop_exit
    _

</llo_original>
